<compile_context>
chip_gen: v7x
topology: tpu7x:2x2x1
jax: 0.10.0
libtpu: 0.0.40
codegen_flags: <defaults>
</compile_context>

<pallas_src>
import functools
import math

import jax
import jax.numpy as jnp
from jax.experimental import pallas as pl
from jax.experimental.pallas import tpu as pltpu

VMEM_SPEC = pl.BlockSpec(memory_space=pltpu.MemorySpace.VMEM)
LN_EPS = 1e-5


# --------------------------------------------------------------------- kernel helpers
def _dot(a, b):
    """MXU matmul, bf16 operands, f32 accumulation (weights are pre-cast to bf16)."""
    return jnp.dot(a.astype(jnp.bfloat16), b.astype(jnp.bfloat16),
                   preferred_element_type=jnp.float32)


def _dot_nt(a, b):
    """a @ b.T (contract last axes), bf16 operands, f32 accumulation."""
    return jax.lax.dot_general(
        a.astype(jnp.bfloat16), b.astype(jnp.bfloat16),
        (((1,), (1,)), ((), ())), preferred_element_type=jnp.float32)


def _layernorm(v, g, b):
    mu = jnp.mean(v, axis=-1, keepdims=True)
    var = jnp.mean((v - mu) ** 2, axis=-1, keepdims=True)
    return (v - mu) * jax.lax.rsqrt(var + LN_EPS) * g + b


def _virtual_node(h, vn):
    """VirtualNode: global sum -> Linear -> LayerNorm -> Linear -> broadcast add."""
    gc = jnp.sum(h, axis=0, keepdims=True)
    gc = _dot(gc, vn['wa']) + vn['ba']
    gc = _layernorm(gc, vn['g'], vn['b'])
    return h + _dot(gc, vn['wd']) + vn['bd']


def _agt_block(x, pos, mask, blk):
    """AGTBlock: MLP(first Linear+ReLU; second Linear folded into wqkv) -> packed QKV
    projection + per-head LayerNorm -> pos-emb + L2-norm -> scores + pos-sim -> kNN mask
    -> softmax -> attn @ V -> residual -> LayerNorm."""
    hd = blk['norm_g'].shape[-1]
    inv_scale = 1.0 / math.sqrt(hd)

    # mlp: Linear -> ReLU -> (Dropout = identity); second Linear folded into wqkv/bqkv.
    hm = jnp.maximum(_dot(x, blk['mlp_w1']) + blk['mlp_b1'], 0.0)

    # packed Q/K/V projection (one MXU matmul), then per-head LayerNorms.
    qkv = _dot(hm, blk['wqkv']) + blk['bqkv']
    g, B = blk['gqkv'], blk['Bqkv']
    q = _layernorm(qkv[:, 0 * hd:1 * hd], g[:, 0 * hd:1 * hd], B[:, 0 * hd:1 * hd])
    k = _layernorm(qkv[:, 1 * hd:2 * hd], g[:, 1 * hd:2 * hd], B[:, 1 * hd:2 * hd])
    v = _layernorm(qkv[:, 2 * hd:3 * hd], g[:, 2 * hd:3 * hd], B[:, 2 * hd:3 * hd])

    # position embedding + F.normalize(p=2, dim=-1, eps=1e-12) via one rsqrt.
    pe = _dot(pos, blk['wp']) + blk['bp']
    pe = pe * jax.lax.rsqrt(jnp.maximum(jnp.sum(pe * pe, axis=-1, keepdims=True), 1e-24))

    # scores (1/scale as multiply) + positional similarity + kNN mask.
    # scores*m + (m-1)*1e4 reproduces masked_fill(mask==0, -10000) exactly.
    scores = _dot_nt(q, k) * inv_scale + _dot_nt(pe, pe)
    scores = scores * mask + (mask - 1.0) * 10000.0

    # softmax (attention dropout = identity in eval).
    smax = jnp.max(scores, axis=-1, keepdims=True)
    e = jnp.exp(scores - smax)
    attn = e * pl.reciprocal(jnp.sum(e, axis=-1, keepdims=True), approx=True)

    upd = _dot(attn, v)

    # residual (Identity when input_dim == output_dim) + block LayerNorm.
    if 'res_w' in blk:
        residual = _dot(x, blk['res_w']) + blk['res_b']
    else:
        residual = x
    out = _layernorm(upd + residual, blk['norm_g'], blk['norm_b'])
    return out, attn


# ----------------------------------------------------------------- fused encoder kernel
def _encoder_kernel(*refs, treedef, n_leaves):
    """One fused kernel for the whole encoder.  Inputs: x, pos_pad, mask, *param_leaves.
    Outputs: per-stage features (post-VirtualNode), then one [N,N] attention map per
    AGT block (in stage/block order)."""
    x_ref, pos_ref, mask_ref = refs[0], refs[1], refs[2]
    param_vals = [r[...] for r in refs[3:3 + n_leaves]]
    params = jax.tree_util.tree_unflatten(treedef, param_vals)
    out_refs = refs[3 + n_leaves:]

    stages = params['stages']
    vnodes = params['vnodes']
    feat_refs = out_refs[:len(stages)]
    attn_refs = out_refs[len(stages):]

    x = x_ref[...]
    pos = pos_ref[...]
    mask = mask_ref[...]

    ai = 0
    for si, (stage, vn) in enumerate(zip(stages, vnodes)):
        if 'blocks' in stage:
            for blk in stage['blocks']:
                x, aw = _agt_block(x, pos, mask, blk)
                attn_refs[ai][...] = aw
                ai += 1
        else:
            # Stage 0: Linear -> ReLU -> (Dropout = identity) -> Linear.
            h = jnp.maximum(_dot(x, stage['w1']) + stage['b1'], 0.0)
            x = _dot(h, stage['w2']) + stage['b2']
        x = _virtual_node(x, vn)
        feat_refs[si][...] = x


# ------------------------------------------------------------------- glue (plain JAX)
def knn_mask(pos, k):
    """Dense [N, N] 0/1 mask equivalent to knn_graph(pos, k, loop=False) followed by
    mask[rows, cols] = 1 (rows = neighbors/sources, cols = centers/targets).
    Distances via Gram matrix; runs as plain jitted XLA, computed once per forward."""
    n = pos.shape[0]
    sq = jnp.sum(pos * pos, axis=-1)
    d2 = sq[:, None] + sq[None, :] - 2.0 * (pos @ pos.T)
    d2 = d2 + jnp.eye(n, dtype=d2.dtype) * 1e10    # loop=False: exclude self
    _, nbrs = jax.lax.top_k(-d2, k)                # k nearest neighbors of each center
    rows = nbrs.reshape(-1)                        # sources (neighbors)
    cols = jnp.repeat(jnp.arange(n), k)            # targets (centers)
    return jnp.zeros((n, n), jnp.float32).at[rows, cols].set(1.0)


@functools.partial(jax.jit, static_argnums=(4,))
def encoder_forward(params, x, pos, labels, knn_param):
    n = x.shape[0]
    pos_pad = jnp.pad(pos, ((0, 0), (0, 5))).astype(jnp.bfloat16)  # [N,3] -> [N,8]
    # pos never changes (all stages use downsample_ratio=None) -> build kNN graph once.
    mask = knn_mask(pos, knn_param)

    leaves, treedef = jax.tree_util.tree_flatten(params)
    stages = params['stages']

    # Output shapes: one [N, hd] feature per stage, then one [N, N] map per AGT block.
    out_shapes, stage_hds, attn_counts = [], [], []
    for stage in stages:
        if 'blocks' in stage:
            hd = stage['blocks'][-1]['norm_g'].shape[-1]
            attn_counts.append(len(stage['blocks']))
        else:
            hd = stage['w2'].shape[-1]
            attn_counts.append(0)
        stage_hds.append(hd)
        out_shapes.append(jax.ShapeDtypeStruct((n, hd), jnp.float32))
    for stage in stages:
        if 'blocks' in stage:
            out_shapes += [jax.ShapeDtypeStruct((n, n), jnp.float32)
                           for _ in stage['blocks']]

    # Advisory cost estimate (matmul flops + exp count).
    flops, transcendentals = 0, 0
    for stage, hd in zip(stages, stage_hds):
        if 'blocks' in stage:
            for blk in stage['blocks']:
                din, hdb = blk['mlp_w1'].shape
                flops += 2 * n * (din * hdb + hdb * 3 * hdb + 8 * hdb) + 6 * n * n * hdb
                if 'res_w' in blk:
                    flops += 2 * n * din * hdb
                transcendentals += n * n + 8 * n
        else:
            din, hds = stage['w1'].shape
            flops += 2 * n * (din * hds + hds * hds)
        flops += 4 * hd * hd + 4 * n * hd
        transcendentals += 2
    bytes_accessed = sum(int(l.size) * l.dtype.itemsize for l in leaves)
    bytes_accessed += x.size * 4 + pos_pad.size * 2 + mask.size * 4
    bytes_accessed += sum(math.prod(s.shape) * 4 for s in out_shapes)

    kernel = functools.partial(_encoder_kernel, treedef=treedef, n_leaves=len(leaves))
    outs = pl.pallas_call(
        kernel,
        out_shape=tuple(out_shapes),
        in_specs=[VMEM_SPEC] * (3 + len(leaves)),
        out_specs=tuple([VMEM_SPEC] * len(out_shapes)),
        cost_estimate=pl.CostEstimate(flops=flops, transcendentals=transcendentals,
                                      bytes_accessed=bytes_accessed),
    )(x, pos_pad, mask, *leaves)

    n_stages = len(stages)
    feats = list(outs[:n_stages])
    attn_flat = list(outs[n_stages:])

    features, positions, sampled_labels, attention_maps = [], [], [], []
    ai = 0
    for feat, cnt in zip(feats, attn_counts):
        features.append(feat)
        positions.append(pos)
        sampled_labels.append(labels)
        if cnt > 0:
            attention_maps.append(attn_flat[ai:ai + cnt])
            ai += cnt
    return features, positions, sampled_labels, attention_maps


# --------------------------------------------------------------------- parameter init
def init_linear(key, din, dout, bound_in=None):
    kw, kb = jax.random.split(key)
    bound = 1.0 / math.sqrt(bound_in if bound_in is not None else din)
    w = jax.random.uniform(kw, (din, dout), jnp.float32, -bound, bound)
    b = jax.random.uniform(kb, (1, dout), jnp.float32, -bound, bound)
    return w, b


def init_vnode(key, hd):
    ka, kd = jax.random.split(key)
    wa, ba = init_linear(ka, hd, hd)
    wd, bd = init_linear(kd, hd, hd)
    return dict(wa=wa.astype(jnp.bfloat16), ba=ba,
                wd=wd.astype(jnp.bfloat16), bd=bd,
                g=jnp.ones((1, hd), jnp.float32),
                b=jnp.zeros((1, hd), jnp.float32))


def init_agt_block(key, din, hd):
    k1, k2, kq, kk, kv, kp, kr = jax.random.split(key, 7)
    w1, b1 = init_linear(k1, din, hd)
    w2, b2 = init_linear(k2, hd, hd)
    wq, bq = init_linear(kq, hd, hd)
    wk, bk = init_linear(kk, hd, hd)
    wv, bv = init_linear(kv, hd, hd)
    wqkv = jnp.concatenate([wq, wk, wv], axis=1)          # packed [hd, 3*hd]
    bqkv = jnp.concatenate([bq, bk, bv], axis=1)          # packed [1, 3*hd]
    # Fold the MLP's second Linear into the packed QKV projection (exact in f32):
    #   qkv = (hm@w2 + b2)@wqkv + bqkv = hm@(w2@wqkv) + (b2@wqkv + bqkv)
    wqkv_f = (w2 @ wqkv).astype(jnp.bfloat16)
    bqkv_f = b2 @ wqkv + bqkv
    # position embedding: logical Linear(3, hd); stored padded to in-dim 8, extra rows 0.
    wp, bp = init_linear(kp, 8, hd, bound_in=3)
    wp = wp.at[3:, :].set(0.0)
    blk = dict(
        mlp_w1=w1.astype(jnp.bfloat16), mlp_b1=b1,
        wqkv=wqkv_f, bqkv=bqkv_f,
        gqkv=jnp.ones((1, 3 * hd), jnp.float32),           # packed q/k/v LayerNorm gammas
        Bqkv=jnp.zeros((1, 3 * hd), jnp.float32),          # packed q/k/v LayerNorm betas
        wp=wp.astype(jnp.bfloat16), bp=bp,
        norm_g=jnp.ones((1, hd), jnp.float32),
        norm_b=jnp.zeros((1, hd), jnp.float32),
    )
    if din != hd:
        rw, rb = init_linear(kr, din, hd)
        blk['res_w'] = rw.astype(jnp.bfloat16)
        blk['res_b'] = rb
    return blk


def init_encoder_params(key, input_dim, stages_config):
    stages, vnodes = [], []
    current = input_dim
    for idx, cfg in enumerate(stages_config):
        hd = cfg['hidden_dim']
        if idx == 0:
            key, k1, k2 = jax.random.split(key, 3)
            w1, b1 = init_linear(k1, current, hd)
            w2, b2 = init_linear(k2, hd, hd)
            sp = dict(w1=w1.astype(jnp.bfloat16), b1=b1,
                      w2=w2.astype(jnp.bfloat16), b2=b2)
        else:
            blocks = []
            for li in range(cfg['num_layers']):
                din = current if li == 0 else hd
                key, kb = jax.random.split(key)
                blocks.append(init_agt_block(kb, din, hd))
            sp = dict(blocks=blocks)
        key, kv = jax.random.split(key)
        stages.append(sp)
        vnodes.append(init_vnode(kv, hd))
        current = hd
    return dict(stages=stages, vnodes=vnodes)


# ----------------------------------------------------------------------------- main
if __name__ == "__main__":
    key = jax.random.PRNGKey(0)
    N, input_dim, knn_param = 16, 8, 4
    stages_config = [
        {'hidden_dim': 32, 'num_layers': 1},   # stage 0: plain MLP stage
        {'hidden_dim': 32, 'num_layers': 2},   # stage 1: graph-attention Stage
    ]

    kx, kp, kl, kparams = jax.random.split(key, 4)
    x = jax.random.normal(kx, (N, input_dim), jnp.float32)
    pos = jax.random.normal(kp, (N, 3), jnp.float32)
    labels = jax.random.randint(kl, (N,), 0, 5)

    params = init_encoder_params(kparams, input_dim, stages_config)

    features, positions, sampled_labels, attention_maps = encoder_forward(
        params, x, pos, labels, knn_param)
    jax.block_until_ready((features, positions, sampled_labels, attention_maps))

    assert len(features) == 2
    assert features[0].shape == (N, 32) and features[1].shape == (N, 32)
    assert len(positions) == 2 and positions[0].shape == (N, 3)
    assert len(sampled_labels) == 2 and sampled_labels[0].shape == (N,)
    assert len(attention_maps) == 1 and len(attention_maps[0]) == 2
    assert attention_maps[0][0].shape == (N, N)
    assert all(bool(jnp.all(jnp.isfinite(f))) for f in features)
    assert all(bool(jnp.all(jnp.isfinite(a))) for a in attention_maps[0])
    # attention rows are a softmax -> each row sums to ~1
    assert bool(jnp.allclose(jnp.sum(attention_maps[0][0], axis=-1), 1.0, atol=1e-2))
    print("KERNEL_OK")
</pallas_src>

<mosaic_0001>
module attributes {stable_mosaic.version = 11 : i64} {
  func.func @_encoder_kernel(%arg0: memref<16x8xf32, #tpu.memory_space<vmem>>, %arg1: memref<16x8xbf16, #tpu.memory_space<vmem>>, %arg2: memref<16x16xf32, #tpu.memory_space<vmem>>, %arg3: memref<1x32xf32, #tpu.memory_space<vmem>>, %arg4: memref<1x32xf32, #tpu.memory_space<vmem>>, %arg5: memref<8x32xbf16, #tpu.memory_space<vmem>>, %arg6: memref<32x32xbf16, #tpu.memory_space<vmem>>, %arg7: memref<1x96xf32, #tpu.memory_space<vmem>>, %arg8: memref<1x32xf32, #tpu.memory_space<vmem>>, %arg9: memref<1x96xf32, #tpu.memory_space<vmem>>, %arg10: memref<1x96xf32, #tpu.memory_space<vmem>>, %arg11: memref<1x32xf32, #tpu.memory_space<vmem>>, %arg12: memref<32x32xbf16, #tpu.memory_space<vmem>>, %arg13: memref<1x32xf32, #tpu.memory_space<vmem>>, %arg14: memref<1x32xf32, #tpu.memory_space<vmem>>, %arg15: memref<8x32xbf16, #tpu.memory_space<vmem>>, %arg16: memref<32x96xbf16, #tpu.memory_space<vmem>>, %arg17: memref<1x96xf32, #tpu.memory_space<vmem>>, %arg18: memref<1x32xf32, #tpu.memory_space<vmem>>, %arg19: memref<1x96xf32, #tpu.memory_space<vmem>>, %arg20: memref<1x96xf32, #tpu.memory_space<vmem>>, %arg21: memref<1x32xf32, #tpu.memory_space<vmem>>, %arg22: memref<32x32xbf16, #tpu.memory_space<vmem>>, %arg23: memref<1x32xf32, #tpu.memory_space<vmem>>, %arg24: memref<1x32xf32, #tpu.memory_space<vmem>>, %arg25: memref<8x32xbf16, #tpu.memory_space<vmem>>, %arg26: memref<32x96xbf16, #tpu.memory_space<vmem>>, %arg27: memref<1x32xf32, #tpu.memory_space<vmem>>, %arg28: memref<1x32xf32, #tpu.memory_space<vmem>>, %arg29: memref<1x32xf32, #tpu.memory_space<vmem>>, %arg30: memref<1x32xf32, #tpu.memory_space<vmem>>, %arg31: memref<32x32xbf16, #tpu.memory_space<vmem>>, %arg32: memref<32x32xbf16, #tpu.memory_space<vmem>>, %arg33: memref<1x32xf32, #tpu.memory_space<vmem>>, %arg34: memref<1x32xf32, #tpu.memory_space<vmem>>, %arg35: memref<1x32xf32, #tpu.memory_space<vmem>>, %arg36: memref<1x32xf32, #tpu.memory_space<vmem>>, %arg37: memref<32x32xbf16, #tpu.memory_space<vmem>>, %arg38: memref<32x32xbf16, #tpu.memory_space<vmem>>, %arg39: memref<16x32xf32, #tpu.memory_space<vmem>>, %arg40: memref<16x32xf32, #tpu.memory_space<vmem>>, %arg41: memref<16x16xf32, #tpu.memory_space<vmem>>, %arg42: memref<16x16xf32, #tpu.memory_space<vmem>>) attributes {dimension_semantics = [], scalar_prefetch = 0 : i64, scratch_operands = 0 : i64, tpu.core_type = #tpu.core_type<tc>} {
    %c0 = arith.constant 0 : index
    %c0_0 = arith.constant 0 : index
    %0 = vector.load %arg3[%c0, %c0_0] : memref<1x32xf32, #tpu.memory_space<vmem>>, vector<1x32xf32>
    %c0_1 = arith.constant 0 : index
    %c0_2 = arith.constant 0 : index
    %1 = vector.load %arg4[%c0_1, %c0_2] : memref<1x32xf32, #tpu.memory_space<vmem>>, vector<1x32xf32>
    %c0_3 = arith.constant 0 : index
    %c0_4 = arith.constant 0 : index
    %2 = vector.load %arg5[%c0_3, %c0_4] : memref<8x32xbf16, #tpu.memory_space<vmem>>, vector<8x32xbf16>
    %c0_5 = arith.constant 0 : index
    %c0_6 = arith.constant 0 : index
    %3 = vector.load %arg6[%c0_5, %c0_6] : memref<32x32xbf16, #tpu.memory_space<vmem>>, vector<32x32xbf16>
    %c0_7 = arith.constant 0 : index
    %c0_8 = arith.constant 0 : index
    %4 = vector.load %arg7[%c0_7, %c0_8] : memref<1x96xf32, #tpu.memory_space<vmem>>, vector<1x96xf32>
    %c0_9 = arith.constant 0 : index
    %c0_10 = arith.constant 0 : index
    %5 = vector.load %arg8[%c0_9, %c0_10] : memref<1x32xf32, #tpu.memory_space<vmem>>, vector<1x32xf32>
    %c0_11 = arith.constant 0 : index
    %c0_12 = arith.constant 0 : index
    %6 = vector.load %arg9[%c0_11, %c0_12] : memref<1x96xf32, #tpu.memory_space<vmem>>, vector<1x96xf32>
    %c0_13 = arith.constant 0 : index
    %c0_14 = arith.constant 0 : index
    %7 = vector.load %arg10[%c0_13, %c0_14] : memref<1x96xf32, #tpu.memory_space<vmem>>, vector<1x96xf32>
    %c0_15 = arith.constant 0 : index
    %c0_16 = arith.constant 0 : index
    %8 = vector.load %arg11[%c0_15, %c0_16] : memref<1x32xf32, #tpu.memory_space<vmem>>, vector<1x32xf32>
    %c0_17 = arith.constant 0 : index
    %c0_18 = arith.constant 0 : index
    %9 = vector.load %arg12[%c0_17, %c0_18] : memref<32x32xbf16, #tpu.memory_space<vmem>>, vector<32x32xbf16>
    %c0_19 = arith.constant 0 : index
    %c0_20 = arith.constant 0 : index
    %10 = vector.load %arg13[%c0_19, %c0_20] : memref<1x32xf32, #tpu.memory_space<vmem>>, vector<1x32xf32>
    %c0_21 = arith.constant 0 : index
    %c0_22 = arith.constant 0 : index
    %11 = vector.load %arg14[%c0_21, %c0_22] : memref<1x32xf32, #tpu.memory_space<vmem>>, vector<1x32xf32>
    %c0_23 = arith.constant 0 : index
    %c0_24 = arith.constant 0 : index
    %12 = vector.load %arg15[%c0_23, %c0_24] : memref<8x32xbf16, #tpu.memory_space<vmem>>, vector<8x32xbf16>
    %c0_25 = arith.constant 0 : index
    %c0_26 = arith.constant 0 : index
    %13 = vector.load %arg16[%c0_25, %c0_26] : memref<32x96xbf16, #tpu.memory_space<vmem>>, vector<32x96xbf16>
    %c0_27 = arith.constant 0 : index
    %c0_28 = arith.constant 0 : index
    %14 = vector.load %arg17[%c0_27, %c0_28] : memref<1x96xf32, #tpu.memory_space<vmem>>, vector<1x96xf32>
    %c0_29 = arith.constant 0 : index
    %c0_30 = arith.constant 0 : index
    %15 = vector.load %arg18[%c0_29, %c0_30] : memref<1x32xf32, #tpu.memory_space<vmem>>, vector<1x32xf32>
    %c0_31 = arith.constant 0 : index
    %c0_32 = arith.constant 0 : index
    %16 = vector.load %arg19[%c0_31, %c0_32] : memref<1x96xf32, #tpu.memory_space<vmem>>, vector<1x96xf32>
    %c0_33 = arith.constant 0 : index
    %c0_34 = arith.constant 0 : index
    %17 = vector.load %arg20[%c0_33, %c0_34] : memref<1x96xf32, #tpu.memory_space<vmem>>, vector<1x96xf32>
    %c0_35 = arith.constant 0 : index
    %c0_36 = arith.constant 0 : index
    %18 = vector.load %arg21[%c0_35, %c0_36] : memref<1x32xf32, #tpu.memory_space<vmem>>, vector<1x32xf32>
    %c0_37 = arith.constant 0 : index
    %c0_38 = arith.constant 0 : index
    %19 = vector.load %arg22[%c0_37, %c0_38] : memref<32x32xbf16, #tpu.memory_space<vmem>>, vector<32x32xbf16>
    %c0_39 = arith.constant 0 : index
    %c0_40 = arith.constant 0 : index
    %20 = vector.load %arg23[%c0_39, %c0_40] : memref<1x32xf32, #tpu.memory_space<vmem>>, vector<1x32xf32>
    %c0_41 = arith.constant 0 : index
    %c0_42 = arith.constant 0 : index
    %21 = vector.load %arg24[%c0_41, %c0_42] : memref<1x32xf32, #tpu.memory_space<vmem>>, vector<1x32xf32>
    %c0_43 = arith.constant 0 : index
    %c0_44 = arith.constant 0 : index
    %22 = vector.load %arg25[%c0_43, %c0_44] : memref<8x32xbf16, #tpu.memory_space<vmem>>, vector<8x32xbf16>
    %c0_45 = arith.constant 0 : index
    %c0_46 = arith.constant 0 : index
    %23 = vector.load %arg26[%c0_45, %c0_46] : memref<32x96xbf16, #tpu.memory_space<vmem>>, vector<32x96xbf16>
    %c0_47 = arith.constant 0 : index
    %c0_48 = arith.constant 0 : index
    %24 = vector.load %arg27[%c0_47, %c0_48] : memref<1x32xf32, #tpu.memory_space<vmem>>, vector<1x32xf32>
    %c0_49 = arith.constant 0 : index
    %c0_50 = arith.constant 0 : index
    %25 = vector.load %arg28[%c0_49, %c0_50] : memref<1x32xf32, #tpu.memory_space<vmem>>, vector<1x32xf32>
    %c0_51 = arith.constant 0 : index
    %c0_52 = arith.constant 0 : index
    %26 = vector.load %arg29[%c0_51, %c0_52] : memref<1x32xf32, #tpu.memory_space<vmem>>, vector<1x32xf32>
    %c0_53 = arith.constant 0 : index
    %c0_54 = arith.constant 0 : index
    %27 = vector.load %arg30[%c0_53, %c0_54] : memref<1x32xf32, #tpu.memory_space<vmem>>, vector<1x32xf32>
    %c0_55 = arith.constant 0 : index
    %c0_56 = arith.constant 0 : index
    %28 = vector.load %arg31[%c0_55, %c0_56] : memref<32x32xbf16, #tpu.memory_space<vmem>>, vector<32x32xbf16>
    %c0_57 = arith.constant 0 : index
    %c0_58 = arith.constant 0 : index
    %29 = vector.load %arg32[%c0_57, %c0_58] : memref<32x32xbf16, #tpu.memory_space<vmem>>, vector<32x32xbf16>
    %c0_59 = arith.constant 0 : index
    %c0_60 = arith.constant 0 : index
    %30 = vector.load %arg33[%c0_59, %c0_60] : memref<1x32xf32, #tpu.memory_space<vmem>>, vector<1x32xf32>
    %c0_61 = arith.constant 0 : index
    %c0_62 = arith.constant 0 : index
    %31 = vector.load %arg34[%c0_61, %c0_62] : memref<1x32xf32, #tpu.memory_space<vmem>>, vector<1x32xf32>
    %c0_63 = arith.constant 0 : index
    %c0_64 = arith.constant 0 : index
    %32 = vector.load %arg35[%c0_63, %c0_64] : memref<1x32xf32, #tpu.memory_space<vmem>>, vector<1x32xf32>
    %c0_65 = arith.constant 0 : index
    %c0_66 = arith.constant 0 : index
    %33 = vector.load %arg36[%c0_65, %c0_66] : memref<1x32xf32, #tpu.memory_space<vmem>>, vector<1x32xf32>
    %c0_67 = arith.constant 0 : index
    %c0_68 = arith.constant 0 : index
    %34 = vector.load %arg37[%c0_67, %c0_68] : memref<32x32xbf16, #tpu.memory_space<vmem>>, vector<32x32xbf16>
    %c0_69 = arith.constant 0 : index
    %c0_70 = arith.constant 0 : index
    %35 = vector.load %arg38[%c0_69, %c0_70] : memref<32x32xbf16, #tpu.memory_space<vmem>>, vector<32x32xbf16>
    %c0_71 = arith.constant 0 : index
    %c0_72 = arith.constant 0 : index
    %36 = vector.load %arg0[%c0_71, %c0_72] : memref<16x8xf32, #tpu.memory_space<vmem>>, vector<16x8xf32>
    %c0_73 = arith.constant 0 : index
    %c0_74 = arith.constant 0 : index
    %37 = vector.load %arg1[%c0_73, %c0_74] : memref<16x8xbf16, #tpu.memory_space<vmem>>, vector<16x8xbf16>
    %c0_75 = arith.constant 0 : index
    %c0_76 = arith.constant 0 : index
    %38 = vector.load %arg2[%c0_75, %c0_76] : memref<16x16xf32, #tpu.memory_space<vmem>>, vector<16x16xf32>
    %39 = arith.truncf %36 : vector<16x8xf32> to vector<16x8xbf16>
    %cst = arith.constant dense<0.000000e+00> : vector<16x32xf32>
    %40 = tpu.matmul %39, %2, %cst {dimension_numbers = #tpu.dot_dimension_numbers<[1], [0], [0], [1], [0, 0, 1, 1], [], []>} : vector<16x8xbf16>, vector<8x32xbf16>, vector<16x32xf32> -> vector<16x32xf32>
    %41 = vector.broadcast %0 : vector<1x32xf32> to vector<16x32xf32>
    %42 = arith.addf %40, %41 : vector<16x32xf32>
    %cst_77 = arith.constant 0.000000e+00 : f32
    %43 = vector.broadcast %cst_77 : f32 to vector<16x32xf32>
    %44 = arith.maximumf %42, %43 : vector<16x32xf32>
    %45 = arith.truncf %44 : vector<16x32xf32> to vector<16x32xbf16>
    %cst_78 = arith.constant dense<0.000000e+00> : vector<16x32xf32>
    %46 = tpu.matmul %45, %3, %cst_78 {dimension_numbers = #tpu.dot_dimension_numbers<[1], [0], [0], [1], [0, 0, 1, 1], [], []>} : vector<16x32xbf16>, vector<32x32xbf16>, vector<16x32xf32> -> vector<16x32xf32>
    %47 = vector.broadcast %1 : vector<1x32xf32> to vector<16x32xf32>
    %48 = arith.addf %46, %47 : vector<16x32xf32>
    %cst_79 = arith.constant dense<0.000000e+00> : vector<32xf32>
    %49 = vector.multi_reduction <add>, %48, %cst_79 [0] : vector<16x32xf32> to vector<32xf32>
    %50 = vector.shape_cast %49 : vector<32xf32> to vector<1x32xf32>
    %51 = arith.truncf %50 : vector<1x32xf32> to vector<1x32xbf16>
    %cst_80 = arith.constant dense<0.000000e+00> : vector<1x32xf32>
    %52 = tpu.matmul %51, %28, %cst_80 {dimension_numbers = #tpu.dot_dimension_numbers<[1], [0], [0], [1], [0, 0, 1, 1], [], []>} : vector<1x32xbf16>, vector<32x32xbf16>, vector<1x32xf32> -> vector<1x32xf32>
    %53 = arith.addf %52, %25 : vector<1x32xf32>
    %cst_81 = arith.constant dense<0.000000e+00> : vector<1xf32>
    %54 = vector.multi_reduction <add>, %53, %cst_81 [1] : vector<1x32xf32> to vector<1xf32>
    %55 = vector.shape_cast %54 : vector<1xf32> to vector<1x1xf32>
    %cst_82 = arith.constant 3.200000e+01 : f32
    %56 = vector.broadcast %cst_82 : f32 to vector<1x1xf32>
    %57 = arith.divf %55, %56 : vector<1x1xf32>
    %58 = vector.broadcast %57 : vector<1x1xf32> to vector<1x32xf32>
    %59 = arith.subf %53, %58 : vector<1x32xf32>
    %60 = arith.mulf %59, %59 : vector<1x32xf32>
    %cst_83 = arith.constant dense<0.000000e+00> : vector<1xf32>
    %61 = vector.multi_reduction <add>, %60, %cst_83 [1] : vector<1x32xf32> to vector<1xf32>
    %62 = vector.shape_cast %61 : vector<1xf32> to vector<1x1xf32>
    %cst_84 = arith.constant 3.200000e+01 : f32
    %63 = vector.broadcast %cst_84 : f32 to vector<1x1xf32>
    %64 = arith.divf %62, %63 : vector<1x1xf32>
    %65 = vector.broadcast %57 : vector<1x1xf32> to vector<1x32xf32>
    %66 = arith.subf %53, %65 : vector<1x32xf32>
    %cst_85 = arith.constant 9.99999974E-6 : f32
    %67 = vector.broadcast %cst_85 : f32 to vector<1x1xf32>
    %68 = arith.addf %64, %67 : vector<1x1xf32>
    %69 = math.rsqrt %68 : vector<1x1xf32>
    %70 = vector.broadcast %69 : vector<1x1xf32> to vector<1x32xf32>
    %71 = arith.mulf %66, %70 : vector<1x32xf32>
    %72 = arith.mulf %71, %27 : vector<1x32xf32>
    %73 = arith.addf %72, %24 : vector<1x32xf32>
    %74 = arith.truncf %73 : vector<1x32xf32> to vector<1x32xbf16>
    %cst_86 = arith.constant dense<0.000000e+00> : vector<1x32xf32>
    %75 = tpu.matmul %74, %29, %cst_86 {dimension_numbers = #tpu.dot_dimension_numbers<[1], [0], [0], [1], [0, 0, 1, 1], [], []>} : vector<1x32xbf16>, vector<32x32xbf16>, vector<1x32xf32> -> vector<1x32xf32>
    %76 = vector.broadcast %75 : vector<1x32xf32> to vector<16x32xf32>
    %77 = arith.addf %48, %76 : vector<16x32xf32>
    %78 = vector.broadcast %26 : vector<1x32xf32> to vector<16x32xf32>
    %79 = arith.addf %77, %78 : vector<16x32xf32>
    %c0_87 = arith.constant 0 : index
    %c0_88 = arith.constant 0 : index
    %80 = vector.load %arg39[%c0_87, %c0_88] : memref<16x32xf32, #tpu.memory_space<vmem>>, vector<16x32xf32>
    tpu.vector_store %arg39[%c0_87, %c0_88], %79 {strides = array<i32>} : memref<16x32xf32, #tpu.memory_space<vmem>>, vector<16x32xf32>,
    %81 = arith.truncf %79 : vector<16x32xf32> to vector<16x32xbf16>
    %cst_89 = arith.constant dense<0.000000e+00> : vector<16x32xf32>
    %82 = tpu.matmul %81, %9, %cst_89 {dimension_numbers = #tpu.dot_dimension_numbers<[1], [0], [0], [1], [0, 0, 1, 1], [], []>} : vector<16x32xbf16>, vector<32x32xbf16>, vector<16x32xf32> -> vector<16x32xf32>
    %83 = vector.broadcast %8 : vector<1x32xf32> to vector<16x32xf32>
    %84 = arith.addf %82, %83 : vector<16x32xf32>
    %cst_90 = arith.constant 0.000000e+00 : f32
    %85 = vector.broadcast %cst_90 : f32 to vector<16x32xf32>
    %86 = arith.maximumf %84, %85 : vector<16x32xf32>
    %87 = arith.truncf %86 : vector<16x32xf32> to vector<16x32xbf16>
    %cst_91 = arith.constant dense<0.000000e+00> : vector<16x96xf32>
    %88 = tpu.matmul %87, %13, %cst_91 {dimension_numbers = #tpu.dot_dimension_numbers<[1], [0], [0], [1], [0, 0, 1, 1], [], []>} : vector<16x32xbf16>, vector<32x96xbf16>, vector<16x96xf32> -> vector<16x96xf32>
    %89 = vector.broadcast %6 : vector<1x96xf32> to vector<16x96xf32>
    %90 = arith.addf %88, %89 : vector<16x96xf32>
    %91 = vector.extract_strided_slice %90 {offsets = [0, 0], sizes = [16, 32], strides = [1, 1]} : vector<16x96xf32> to vector<16x32xf32>
    %92 = vector.extract_strided_slice %7 {offsets = [0, 0], sizes = [1, 32], strides = [1, 1]} : vector<1x96xf32> to vector<1x32xf32>
    %93 = vector.extract_strided_slice %4 {offsets = [0, 0], sizes = [1, 32], strides = [1, 1]} : vector<1x96xf32> to vector<1x32xf32>
    %cst_92 = arith.constant dense<0.000000e+00> : vector<16xf32>
    %94 = vector.multi_reduction <add>, %91, %cst_92 [1] : vector<16x32xf32> to vector<16xf32>
    %95 = vector.shape_cast %94 : vector<16xf32> to vector<16x1xf32>
    %cst_93 = arith.constant 3.200000e+01 : f32
    %96 = vector.broadcast %cst_93 : f32 to vector<16x1xf32>
    %97 = arith.divf %95, %96 : vector<16x1xf32>
    %98 = vector.broadcast %97 : vector<16x1xf32> to vector<16x32xf32>
    %99 = arith.subf %91, %98 : vector<16x32xf32>
    %100 = arith.mulf %99, %99 : vector<16x32xf32>
    %cst_94 = arith.constant dense<0.000000e+00> : vector<16xf32>
    %101 = vector.multi_reduction <add>, %100, %cst_94 [1] : vector<16x32xf32> to vector<16xf32>
    %102 = vector.shape_cast %101 : vector<16xf32> to vector<16x1xf32>
    %cst_95 = arith.constant 3.200000e+01 : f32
    %103 = vector.broadcast %cst_95 : f32 to vector<16x1xf32>
    %104 = arith.divf %102, %103 : vector<16x1xf32>
    %105 = vector.broadcast %97 : vector<16x1xf32> to vector<16x32xf32>
    %106 = arith.subf %91, %105 : vector<16x32xf32>
    %cst_96 = arith.constant 9.99999974E-6 : f32
    %107 = vector.broadcast %cst_96 : f32 to vector<16x1xf32>
    %108 = arith.addf %104, %107 : vector<16x1xf32>
    %109 = math.rsqrt %108 : vector<16x1xf32>
    %110 = vector.broadcast %109 : vector<16x1xf32> to vector<16x32xf32>
    %111 = arith.mulf %106, %110 : vector<16x32xf32>
    %112 = vector.broadcast %92 : vector<1x32xf32> to vector<16x32xf32>
    %113 = arith.mulf %111, %112 : vector<16x32xf32>
    %114 = vector.broadcast %93 : vector<1x32xf32> to vector<16x32xf32>
    %115 = arith.addf %113, %114 : vector<16x32xf32>
    %116 = vector.extract_strided_slice %90 {offsets = [0, 32], sizes = [16, 32], strides = [1, 1]} : vector<16x96xf32> to vector<16x32xf32>
    %117 = vector.extract_strided_slice %7 {offsets = [0, 32], sizes = [1, 32], strides = [1, 1]} : vector<1x96xf32> to vector<1x32xf32>
    %118 = vector.extract_strided_slice %4 {offsets = [0, 32], sizes = [1, 32], strides = [1, 1]} : vector<1x96xf32> to vector<1x32xf32>
    %cst_97 = arith.constant dense<0.000000e+00> : vector<16xf32>
    %119 = vector.multi_reduction <add>, %116, %cst_97 [1] : vector<16x32xf32> to vector<16xf32>
    %120 = vector.shape_cast %119 : vector<16xf32> to vector<16x1xf32>
    %cst_98 = arith.constant 3.200000e+01 : f32
    %121 = vector.broadcast %cst_98 : f32 to vector<16x1xf32>
    %122 = arith.divf %120, %121 : vector<16x1xf32>
    %123 = vector.broadcast %122 : vector<16x1xf32> to vector<16x32xf32>
    %124 = arith.subf %116, %123 : vector<16x32xf32>
    %125 = arith.mulf %124, %124 : vector<16x32xf32>
    %cst_99 = arith.constant dense<0.000000e+00> : vector<16xf32>
    %126 = vector.multi_reduction <add>, %125, %cst_99 [1] : vector<16x32xf32> to vector<16xf32>
    %127 = vector.shape_cast %126 : vector<16xf32> to vector<16x1xf32>
    %cst_100 = arith.constant 3.200000e+01 : f32
    %128 = vector.broadcast %cst_100 : f32 to vector<16x1xf32>
    %129 = arith.divf %127, %128 : vector<16x1xf32>
    %130 = vector.broadcast %122 : vector<16x1xf32> to vector<16x32xf32>
    %131 = arith.subf %116, %130 : vector<16x32xf32>
    %cst_101 = arith.constant 9.99999974E-6 : f32
    %132 = vector.broadcast %cst_101 : f32 to vector<16x1xf32>
    %133 = arith.addf %129, %132 : vector<16x1xf32>
    %134 = math.rsqrt %133 : vector<16x1xf32>
    %135 = vector.broadcast %134 : vector<16x1xf32> to vector<16x32xf32>
    %136 = arith.mulf %131, %135 : vector<16x32xf32>
    %137 = vector.broadcast %117 : vector<1x32xf32> to vector<16x32xf32>
    %138 = arith.mulf %136, %137 : vector<16x32xf32>
    %139 = vector.broadcast %118 : vector<1x32xf32> to vector<16x32xf32>
    %140 = arith.addf %138, %139 : vector<16x32xf32>
    %141 = vector.extract_strided_slice %90 {offsets = [0, 64], sizes = [16, 32], strides = [1, 1]} : vector<16x96xf32> to vector<16x32xf32>
    %142 = vector.extract_strided_slice %7 {offsets = [0, 64], sizes = [1, 32], strides = [1, 1]} : vector<1x96xf32> to vector<1x32xf32>
    %143 = vector.extract_strided_slice %4 {offsets = [0, 64], sizes = [1, 32], strides = [1, 1]} : vector<1x96xf32> to vector<1x32xf32>
    %cst_102 = arith.constant dense<0.000000e+00> : vector<16xf32>
    %144 = vector.multi_reduction <add>, %141, %cst_102 [1] : vector<16x32xf32> to vector<16xf32>
    %145 = vector.shape_cast %144 : vector<16xf32> to vector<16x1xf32>
    %cst_103 = arith.constant 3.200000e+01 : f32
    %146 = vector.broadcast %cst_103 : f32 to vector<16x1xf32>
    %147 = arith.divf %145, %146 : vector<16x1xf32>
    %148 = vector.broadcast %147 : vector<16x1xf32> to vector<16x32xf32>
    %149 = arith.subf %141, %148 : vector<16x32xf32>
    %150 = arith.mulf %149, %149 : vector<16x32xf32>
    %cst_104 = arith.constant dense<0.000000e+00> : vector<16xf32>
    %151 = vector.multi_reduction <add>, %150, %cst_104 [1] : vector<16x32xf32> to vector<16xf32>
    %152 = vector.shape_cast %151 : vector<16xf32> to vector<16x1xf32>
    %cst_105 = arith.constant 3.200000e+01 : f32
    %153 = vector.broadcast %cst_105 : f32 to vector<16x1xf32>
    %154 = arith.divf %152, %153 : vector<16x1xf32>
    %155 = vector.broadcast %147 : vector<16x1xf32> to vector<16x32xf32>
    %156 = arith.subf %141, %155 : vector<16x32xf32>
    %cst_106 = arith.constant 9.99999974E-6 : f32
    %157 = vector.broadcast %cst_106 : f32 to vector<16x1xf32>
    %158 = arith.addf %154, %157 : vector<16x1xf32>
    %159 = math.rsqrt %158 : vector<16x1xf32>
    %160 = vector.broadcast %159 : vector<16x1xf32> to vector<16x32xf32>
    %161 = arith.mulf %156, %160 : vector<16x32xf32>
    %162 = vector.broadcast %142 : vector<1x32xf32> to vector<16x32xf32>
    %163 = arith.mulf %161, %162 : vector<16x32xf32>
    %164 = vector.broadcast %143 : vector<1x32xf32> to vector<16x32xf32>
    %165 = arith.addf %163, %164 : vector<16x32xf32>
    %cst_107 = arith.constant dense<0.000000e+00> : vector<16x32xf32>
    %166 = tpu.matmul %37, %12, %cst_107 {dimension_numbers = #tpu.dot_dimension_numbers<[1], [0], [0], [1], [0, 0, 1, 1], [], []>} : vector<16x8xbf16>, vector<8x32xbf16>, vector<16x32xf32> -> vector<16x32xf32>
    %167 = vector.broadcast %5 : vector<1x32xf32> to vector<16x32xf32>
    %168 = arith.addf %166, %167 : vector<16x32xf32>
    %169 = arith.mulf %168, %168 : vector<16x32xf32>
    %cst_108 = arith.constant dense<0.000000e+00> : vector<16xf32>
    %170 = vector.multi_reduction <add>, %169, %cst_108 [1] : vector<16x32xf32> to vector<16xf32>
    %171 = vector.shape_cast %170 : vector<16xf32> to vector<16x1xf32>
    %cst_109 = arith.constant 1.000000e-24 : f32
    %172 = vector.broadcast %cst_109 : f32 to vector<16x1xf32>
    %173 = arith.maximumf %171, %172 : vector<16x1xf32>
    %174 = math.rsqrt %173 : vector<16x1xf32>
    %175 = vector.broadcast %174 : vector<16x1xf32> to vector<16x32xf32>
    %176 = arith.mulf %168, %175 : vector<16x32xf32>
    %177 = arith.truncf %115 : vector<16x32xf32> to vector<16x32xbf16>
    %178 = arith.truncf %140 : vector<16x32xf32> to vector<16x32xbf16>
    %cst_110 = arith.constant dense<0.000000e+00> : vector<16x16xf32>
    %179 = tpu.matmul %177, %178, %cst_110 {dimension_numbers = #tpu.dot_dimension_numbers<[1], [1], [0], [0], [0, 0, 1, 0], [], []>} : vector<16x32xbf16>, vector<16x32xbf16>, vector<16x16xf32> -> vector<16x16xf32>
    %cst_111 = arith.constant 0.176776692 : f32
    %180 = vector.broadcast %cst_111 : f32 to vector<16x16xf32>
    %181 = arith.mulf %179, %180 : vector<16x16xf32>
    %182 = arith.truncf %176 : vector<16x32xf32> to vector<16x32xbf16>
    %183 = arith.truncf %176 : vector<16x32xf32> to vector<16x32xbf16>
    %cst_112 = arith.constant dense<0.000000e+00> : vector<16x16xf32>
    %184 = tpu.matmul %182, %183, %cst_112 {dimension_numbers = #tpu.dot_dimension_numbers<[1], [1], [0], [0], [0, 0, 1, 0], [], []>} : vector<16x32xbf16>, vector<16x32xbf16>, vector<16x16xf32> -> vector<16x16xf32>
    %185 = arith.addf %181, %184 : vector<16x16xf32>
    %186 = arith.mulf %185, %38 : vector<16x16xf32>
    %cst_113 = arith.constant 1.000000e+00 : f32
    %187 = vector.broadcast %cst_113 : f32 to vector<16x16xf32>
    %188 = arith.subf %38, %187 : vector<16x16xf32>
    %cst_114 = arith.constant 1.000000e+04 : f32
    %189 = vector.broadcast %cst_114 : f32 to vector<16x16xf32>
    %190 = arith.mulf %188, %189 : vector<16x16xf32>
    %191 = arith.addf %186, %190 : vector<16x16xf32>
    %cst_115 = arith.constant dense<0xFF800000> : vector<16xf32>
    %192 = vector.multi_reduction <maximumf>, %191, %cst_115 [1] : vector<16x16xf32> to vector<16xf32>
    %193 = vector.shape_cast %192 : vector<16xf32> to vector<16x1xf32>
    %194 = vector.broadcast %193 : vector<16x1xf32> to vector<16x16xf32>
    %195 = arith.subf %191, %194 : vector<16x16xf32>
    %196 = math.exp %195 : vector<16x16xf32>
    %cst_116 = arith.constant dense<0.000000e+00> : vector<16xf32>
    %197 = vector.multi_reduction <add>, %196, %cst_116 [1] : vector<16x16xf32> to vector<16xf32>
    %198 = vector.shape_cast %197 : vector<16xf32> to vector<16x1xf32>
    %199 = tpu.reciprocal %198 {approx = true} : vector<16x1xf32> -> vector<16x1xf32>
    %200 = vector.broadcast %199 : vector<16x1xf32> to vector<16x16xf32>
    %201 = arith.mulf %196, %200 : vector<16x16xf32>
    %202 = arith.truncf %201 : vector<16x16xf32> to vector<16x16xbf16>
    %203 = arith.truncf %165 : vector<16x32xf32> to vector<16x32xbf16>
    %cst_117 = arith.constant dense<0.000000e+00> : vector<16x32xf32>
    %204 = tpu.matmul %202, %203, %cst_117 {dimension_numbers = #tpu.dot_dimension_numbers<[1], [0], [0], [1], [0, 0, 1, 1], [], []>} : vector<16x16xbf16>, vector<16x32xbf16>, vector<16x32xf32> -> vector<16x32xf32>
    %205 = arith.addf %204, %79 : vector<16x32xf32>
    %cst_118 = arith.constant dense<0.000000e+00> : vector<16xf32>
    %206 = vector.multi_reduction <add>, %205, %cst_118 [1] : vector<16x32xf32> to vector<16xf32>
    %207 = vector.shape_cast %206 : vector<16xf32> to vector<16x1xf32>
    %cst_119 = arith.constant 3.200000e+01 : f32
    %208 = vector.broadcast %cst_119 : f32 to vector<16x1xf32>
    %209 = arith.divf %207, %208 : vector<16x1xf32>
    %210 = vector.broadcast %209 : vector<16x1xf32> to vector<16x32xf32>
    %211 = arith.subf %205, %210 : vector<16x32xf32>
    %212 = arith.mulf %211, %211 : vector<16x32xf32>
    %cst_120 = arith.constant dense<0.000000e+00> : vector<16xf32>
    %213 = vector.multi_reduction <add>, %212, %cst_120 [1] : vector<16x32xf32> to vector<16xf32>
    %214 = vector.shape_cast %213 : vector<16xf32> to vector<16x1xf32>
    %cst_121 = arith.constant 3.200000e+01 : f32
    %215 = vector.broadcast %cst_121 : f32 to vector<16x1xf32>
    %216 = arith.divf %214, %215 : vector<16x1xf32>
    %217 = vector.broadcast %209 : vector<16x1xf32> to vector<16x32xf32>
    %218 = arith.subf %205, %217 : vector<16x32xf32>
    %cst_122 = arith.constant 9.99999974E-6 : f32
    %219 = vector.broadcast %cst_122 : f32 to vector<16x1xf32>
    %220 = arith.addf %216, %219 : vector<16x1xf32>
    %221 = math.rsqrt %220 : vector<16x1xf32>
    %222 = vector.broadcast %221 : vector<16x1xf32> to vector<16x32xf32>
    %223 = arith.mulf %218, %222 : vector<16x32xf32>
    %224 = vector.broadcast %11 : vector<1x32xf32> to vector<16x32xf32>
    %225 = arith.mulf %223, %224 : vector<16x32xf32>
    %226 = vector.broadcast %10 : vector<1x32xf32> to vector<16x32xf32>
    %227 = arith.addf %225, %226 : vector<16x32xf32>
    %c0_123 = arith.constant 0 : index
    %c0_124 = arith.constant 0 : index
    %228 = vector.load %arg41[%c0_123, %c0_124] : memref<16x16xf32, #tpu.memory_space<vmem>>, vector<16x16xf32>
    tpu.vector_store %arg41[%c0_123, %c0_124], %201 {strides = array<i32>} : memref<16x16xf32, #tpu.memory_space<vmem>>, vector<16x16xf32>,
    %229 = arith.truncf %227 : vector<16x32xf32> to vector<16x32xbf16>
    %cst_125 = arith.constant dense<0.000000e+00> : vector<16x32xf32>
    %230 = tpu.matmul %229, %19, %cst_125 {dimension_numbers = #tpu.dot_dimension_numbers<[1], [0], [0], [1], [0, 0, 1, 1], [], []>} : vector<16x32xbf16>, vector<32x32xbf16>, vector<16x32xf32> -> vector<16x32xf32>
    %231 = vector.broadcast %18 : vector<1x32xf32> to vector<16x32xf32>
    %232 = arith.addf %230, %231 : vector<16x32xf32>
    %cst_126 = arith.constant 0.000000e+00 : f32
    %233 = vector.broadcast %cst_126 : f32 to vector<16x32xf32>
    %234 = arith.maximumf %232, %233 : vector<16x32xf32>
    %235 = arith.truncf %234 : vector<16x32xf32> to vector<16x32xbf16>
    %cst_127 = arith.constant dense<0.000000e+00> : vector<16x96xf32>
    %236 = tpu.matmul %235, %23, %cst_127 {dimension_numbers = #tpu.dot_dimension_numbers<[1], [0], [0], [1], [0, 0, 1, 1], [], []>} : vector<16x32xbf16>, vector<32x96xbf16>, vector<16x96xf32> -> vector<16x96xf32>
    %237 = vector.broadcast %16 : vector<1x96xf32> to vector<16x96xf32>
    %238 = arith.addf %236, %237 : vector<16x96xf32>
    %239 = vector.extract_strided_slice %238 {offsets = [0, 0], sizes = [16, 32], strides = [1, 1]} : vector<16x96xf32> to vector<16x32xf32>
    %240 = vector.extract_strided_slice %17 {offsets = [0, 0], sizes = [1, 32], strides = [1, 1]} : vector<1x96xf32> to vector<1x32xf32>
    %241 = vector.extract_strided_slice %14 {offsets = [0, 0], sizes = [1, 32], strides = [1, 1]} : vector<1x96xf32> to vector<1x32xf32>
    %cst_128 = arith.constant dense<0.000000e+00> : vector<16xf32>
    %242 = vector.multi_reduction <add>, %239, %cst_128 [1] : vector<16x32xf32> to vector<16xf32>
    %243 = vector.shape_cast %242 : vector<16xf32> to vector<16x1xf32>
    %cst_129 = arith.constant 3.200000e+01 : f32
    %244 = vector.broadcast %cst_129 : f32 to vector<16x1xf32>
    %245 = arith.divf %243, %244 : vector<16x1xf32>
    %246 = vector.broadcast %245 : vector<16x1xf32> to vector<16x32xf32>
    %247 = arith.subf %239, %246 : vector<16x32xf32>
    %248 = arith.mulf %247, %247 : vector<16x32xf32>
    %cst_130 = arith.constant dense<0.000000e+00> : vector<16xf32>
    %249 = vector.multi_reduction <add>, %248, %cst_130 [1] : vector<16x32xf32> to vector<16xf32>
    %250 = vector.shape_cast %249 : vector<16xf32> to vector<16x1xf32>
    %cst_131 = arith.constant 3.200000e+01 : f32
    %251 = vector.broadcast %cst_131 : f32 to vector<16x1xf32>
    %252 = arith.divf %250, %251 : vector<16x1xf32>
    %253 = vector.broadcast %245 : vector<16x1xf32> to vector<16x32xf32>
    %254 = arith.subf %239, %253 : vector<16x32xf32>
    %cst_132 = arith.constant 9.99999974E-6 : f32
    %255 = vector.broadcast %cst_132 : f32 to vector<16x1xf32>
    %256 = arith.addf %252, %255 : vector<16x1xf32>
    %257 = math.rsqrt %256 : vector<16x1xf32>
    %258 = vector.broadcast %257 : vector<16x1xf32> to vector<16x32xf32>
    %259 = arith.mulf %254, %258 : vector<16x32xf32>
    %260 = vector.broadcast %240 : vector<1x32xf32> to vector<16x32xf32>
    %261 = arith.mulf %259, %260 : vector<16x32xf32>
    %262 = vector.broadcast %241 : vector<1x32xf32> to vector<16x32xf32>
    %263 = arith.addf %261, %262 : vector<16x32xf32>
    %264 = vector.extract_strided_slice %238 {offsets = [0, 32], sizes = [16, 32], strides = [1, 1]} : vector<16x96xf32> to vector<16x32xf32>
    %265 = vector.extract_strided_slice %17 {offsets = [0, 32], sizes = [1, 32], strides = [1, 1]} : vector<1x96xf32> to vector<1x32xf32>
    %266 = vector.extract_strided_slice %14 {offsets = [0, 32], sizes = [1, 32], strides = [1, 1]} : vector<1x96xf32> to vector<1x32xf32>
    %cst_133 = arith.constant dense<0.000000e+00> : vector<16xf32>
    %267 = vector.multi_reduction <add>, %264, %cst_133 [1] : vector<16x32xf32> to vector<16xf32>
    %268 = vector.shape_cast %267 : vector<16xf32> to vector<16x1xf32>
    %cst_134 = arith.constant 3.200000e+01 : f32
    %269 = vector.broadcast %cst_134 : f32 to vector<16x1xf32>
    %270 = arith.divf %268, %269 : vector<16x1xf32>
    %271 = vector.broadcast %270 : vector<16x1xf32> to vector<16x32xf32>
    %272 = arith.subf %264, %271 : vector<16x32xf32>
    %273 = arith.mulf %272, %272 : vector<16x32xf32>
    %cst_135 = arith.constant dense<0.000000e+00> : vector<16xf32>
    %274 = vector.multi_reduction <add>, %273, %cst_135 [1] : vector<16x32xf32> to vector<16xf32>
    %275 = vector.shape_cast %274 : vector<16xf32> to vector<16x1xf32>
    %cst_136 = arith.constant 3.200000e+01 : f32
    %276 = vector.broadcast %cst_136 : f32 to vector<16x1xf32>
    %277 = arith.divf %275, %276 : vector<16x1xf32>
    %278 = vector.broadcast %270 : vector<16x1xf32> to vector<16x32xf32>
    %279 = arith.subf %264, %278 : vector<16x32xf32>
    %cst_137 = arith.constant 9.99999974E-6 : f32
    %280 = vector.broadcast %cst_137 : f32 to vector<16x1xf32>
    %281 = arith.addf %277, %280 : vector<16x1xf32>
    %282 = math.rsqrt %281 : vector<16x1xf32>
    %283 = vector.broadcast %282 : vector<16x1xf32> to vector<16x32xf32>
    %284 = arith.mulf %279, %283 : vector<16x32xf32>
    %285 = vector.broadcast %265 : vector<1x32xf32> to vector<16x32xf32>
    %286 = arith.mulf %284, %285 : vector<16x32xf32>
    %287 = vector.broadcast %266 : vector<1x32xf32> to vector<16x32xf32>
    %288 = arith.addf %286, %287 : vector<16x32xf32>
    %289 = vector.extract_strided_slice %238 {offsets = [0, 64], sizes = [16, 32], strides = [1, 1]} : vector<16x96xf32> to vector<16x32xf32>
    %290 = vector.extract_strided_slice %17 {offsets = [0, 64], sizes = [1, 32], strides = [1, 1]} : vector<1x96xf32> to vector<1x32xf32>
    %291 = vector.extract_strided_slice %14 {offsets = [0, 64], sizes = [1, 32], strides = [1, 1]} : vector<1x96xf32> to vector<1x32xf32>
    %cst_138 = arith.constant dense<0.000000e+00> : vector<16xf32>
    %292 = vector.multi_reduction <add>, %289, %cst_138 [1] : vector<16x32xf32> to vector<16xf32>
    %293 = vector.shape_cast %292 : vector<16xf32> to vector<16x1xf32>
    %cst_139 = arith.constant 3.200000e+01 : f32
    %294 = vector.broadcast %cst_139 : f32 to vector<16x1xf32>
    %295 = arith.divf %293, %294 : vector<16x1xf32>
    %296 = vector.broadcast %295 : vector<16x1xf32> to vector<16x32xf32>
    %297 = arith.subf %289, %296 : vector<16x32xf32>
    %298 = arith.mulf %297, %297 : vector<16x32xf32>
    %cst_140 = arith.constant dense<0.000000e+00> : vector<16xf32>
    %299 = vector.multi_reduction <add>, %298, %cst_140 [1] : vector<16x32xf32> to vector<16xf32>
    %300 = vector.shape_cast %299 : vector<16xf32> to vector<16x1xf32>
    %cst_141 = arith.constant 3.200000e+01 : f32
    %301 = vector.broadcast %cst_141 : f32 to vector<16x1xf32>
    %302 = arith.divf %300, %301 : vector<16x1xf32>
    %303 = vector.broadcast %295 : vector<16x1xf32> to vector<16x32xf32>
    %304 = arith.subf %289, %303 : vector<16x32xf32>
    %cst_142 = arith.constant 9.99999974E-6 : f32
    %305 = vector.broadcast %cst_142 : f32 to vector<16x1xf32>
    %306 = arith.addf %302, %305 : vector<16x1xf32>
    %307 = math.rsqrt %306 : vector<16x1xf32>
    %308 = vector.broadcast %307 : vector<16x1xf32> to vector<16x32xf32>
    %309 = arith.mulf %304, %308 : vector<16x32xf32>
    %310 = vector.broadcast %290 : vector<1x32xf32> to vector<16x32xf32>
    %311 = arith.mulf %309, %310 : vector<16x32xf32>
    %312 = vector.broadcast %291 : vector<1x32xf32> to vector<16x32xf32>
    %313 = arith.addf %311, %312 : vector<16x32xf32>
    %cst_143 = arith.constant dense<0.000000e+00> : vector<16x32xf32>
    %314 = tpu.matmul %37, %22, %cst_143 {dimension_numbers = #tpu.dot_dimension_numbers<[1], [0], [0], [1], [0, 0, 1, 1], [], []>} : vector<16x8xbf16>, vector<8x32xbf16>, vector<16x32xf32> -> vector<16x32xf32>
    %315 = vector.broadcast %15 : vector<1x32xf32> to vector<16x32xf32>
    %316 = arith.addf %314, %315 : vector<16x32xf32>
    %317 = arith.mulf %316, %316 : vector<16x32xf32>
    %cst_144 = arith.constant dense<0.000000e+00> : vector<16xf32>
    %318 = vector.multi_reduction <add>, %317, %cst_144 [1] : vector<16x32xf32> to vector<16xf32>
    %319 = vector.shape_cast %318 : vector<16xf32> to vector<16x1xf32>
    %cst_145 = arith.constant 1.000000e-24 : f32
    %320 = vector.broadcast %cst_145 : f32 to vector<16x1xf32>
    %321 = arith.maximumf %319, %320 : vector<16x1xf32>
    %322 = math.rsqrt %321 : vector<16x1xf32>
    %323 = vector.broadcast %322 : vector<16x1xf32> to vector<16x32xf32>
    %324 = arith.mulf %316, %323 : vector<16x32xf32>
    %325 = arith.truncf %263 : vector<16x32xf32> to vector<16x32xbf16>
    %326 = arith.truncf %288 : vector<16x32xf32> to vector<16x32xbf16>
    %cst_146 = arith.constant dense<0.000000e+00> : vector<16x16xf32>
    %327 = tpu.matmul %325, %326, %cst_146 {dimension_numbers = #tpu.dot_dimension_numbers<[1], [1], [0], [0], [0, 0, 1, 0], [], []>} : vector<16x32xbf16>, vector<16x32xbf16>, vector<16x16xf32> -> vector<16x16xf32>
    %cst_147 = arith.constant 0.176776692 : f32
    %328 = vector.broadcast %cst_147 : f32 to vector<16x16xf32>
    %329 = arith.mulf %327, %328 : vector<16x16xf32>
    %330 = arith.truncf %324 : vector<16x32xf32> to vector<16x32xbf16>
    %331 = arith.truncf %324 : vector<16x32xf32> to vector<16x32xbf16>
    %cst_148 = arith.constant dense<0.000000e+00> : vector<16x16xf32>
    %332 = tpu.matmul %330, %331, %cst_148 {dimension_numbers = #tpu.dot_dimension_numbers<[1], [1], [0], [0], [0, 0, 1, 0], [], []>} : vector<16x32xbf16>, vector<16x32xbf16>, vector<16x16xf32> -> vector<16x16xf32>
    %333 = arith.addf %329, %332 : vector<16x16xf32>
    %334 = arith.mulf %333, %38 : vector<16x16xf32>
    %cst_149 = arith.constant 1.000000e+00 : f32
    %335 = vector.broadcast %cst_149 : f32 to vector<16x16xf32>
    %336 = arith.subf %38, %335 : vector<16x16xf32>
    %cst_150 = arith.constant 1.000000e+04 : f32
    %337 = vector.broadcast %cst_150 : f32 to vector<16x16xf32>
    %338 = arith.mulf %336, %337 : vector<16x16xf32>
    %339 = arith.addf %334, %338 : vector<16x16xf32>
    %cst_151 = arith.constant dense<0xFF800000> : vector<16xf32>
    %340 = vector.multi_reduction <maximumf>, %339, %cst_151 [1] : vector<16x16xf32> to vector<16xf32>
    %341 = vector.shape_cast %340 : vector<16xf32> to vector<16x1xf32>
    %342 = vector.broadcast %341 : vector<16x1xf32> to vector<16x16xf32>
    %343 = arith.subf %339, %342 : vector<16x16xf32>
    %344 = math.exp %343 : vector<16x16xf32>
    %cst_152 = arith.constant dense<0.000000e+00> : vector<16xf32>
    %345 = vector.multi_reduction <add>, %344, %cst_152 [1] : vector<16x16xf32> to vector<16xf32>
    %346 = vector.shape_cast %345 : vector<16xf32> to vector<16x1xf32>
    %347 = tpu.reciprocal %346 {approx = true} : vector<16x1xf32> -> vector<16x1xf32>
    %348 = vector.broadcast %347 : vector<16x1xf32> to vector<16x16xf32>
    %349 = arith.mulf %344, %348 : vector<16x16xf32>
    %350 = arith.truncf %349 : vector<16x16xf32> to vector<16x16xbf16>
    %351 = arith.truncf %313 : vector<16x32xf32> to vector<16x32xbf16>
    %cst_153 = arith.constant dense<0.000000e+00> : vector<16x32xf32>
    %352 = tpu.matmul %350, %351, %cst_153 {dimension_numbers = #tpu.dot_dimension_numbers<[1], [0], [0], [1], [0, 0, 1, 1], [], []>} : vector<16x16xbf16>, vector<16x32xbf16>, vector<16x32xf32> -> vector<16x32xf32>
    %353 = arith.addf %352, %227 : vector<16x32xf32>
    %cst_154 = arith.constant dense<0.000000e+00> : vector<16xf32>
    %354 = vector.multi_reduction <add>, %353, %cst_154 [1] : vector<16x32xf32> to vector<16xf32>
    %355 = vector.shape_cast %354 : vector<16xf32> to vector<16x1xf32>
    %cst_155 = arith.constant 3.200000e+01 : f32
    %356 = vector.broadcast %cst_155 : f32 to vector<16x1xf32>
    %357 = arith.divf %355, %356 : vector<16x1xf32>
    %358 = vector.broadcast %357 : vector<16x1xf32> to vector<16x32xf32>
    %359 = arith.subf %353, %358 : vector<16x32xf32>
    %360 = arith.mulf %359, %359 : vector<16x32xf32>
    %cst_156 = arith.constant dense<0.000000e+00> : vector<16xf32>
    %361 = vector.multi_reduction <add>, %360, %cst_156 [1] : vector<16x32xf32> to vector<16xf32>
    %362 = vector.shape_cast %361 : vector<16xf32> to vector<16x1xf32>
    %cst_157 = arith.constant 3.200000e+01 : f32
    %363 = vector.broadcast %cst_157 : f32 to vector<16x1xf32>
    %364 = arith.divf %362, %363 : vector<16x1xf32>
    %365 = vector.broadcast %357 : vector<16x1xf32> to vector<16x32xf32>
    %366 = arith.subf %353, %365 : vector<16x32xf32>
    %cst_158 = arith.constant 9.99999974E-6 : f32
    %367 = vector.broadcast %cst_158 : f32 to vector<16x1xf32>
    %368 = arith.addf %364, %367 : vector<16x1xf32>
    %369 = math.rsqrt %368 : vector<16x1xf32>
    %370 = vector.broadcast %369 : vector<16x1xf32> to vector<16x32xf32>
    %371 = arith.mulf %366, %370 : vector<16x32xf32>
    %372 = vector.broadcast %21 : vector<1x32xf32> to vector<16x32xf32>
    %373 = arith.mulf %371, %372 : vector<16x32xf32>
    %374 = vector.broadcast %20 : vector<1x32xf32> to vector<16x32xf32>
    %375 = arith.addf %373, %374 : vector<16x32xf32>
    %c0_159 = arith.constant 0 : index
    %c0_160 = arith.constant 0 : index
    %376 = vector.load %arg42[%c0_159, %c0_160] : memref<16x16xf32, #tpu.memory_space<vmem>>, vector<16x16xf32>
    tpu.vector_store %arg42[%c0_159, %c0_160], %349 {strides = array<i32>} : memref<16x16xf32, #tpu.memory_space<vmem>>, vector<16x16xf32>,
    %cst_161 = arith.constant dense<0.000000e+00> : vector<32xf32>
    %377 = vector.multi_reduction <add>, %375, %cst_161 [0] : vector<16x32xf32> to vector<32xf32>
    %378 = vector.shape_cast %377 : vector<32xf32> to vector<1x32xf32>
    %379 = arith.truncf %378 : vector<1x32xf32> to vector<1x32xbf16>
    %cst_162 = arith.constant dense<0.000000e+00> : vector<1x32xf32>
    %380 = tpu.matmul %379, %34, %cst_162 {dimension_numbers = #tpu.dot_dimension_numbers<[1], [0], [0], [1], [0, 0, 1, 1], [], []>} : vector<1x32xbf16>, vector<32x32xbf16>, vector<1x32xf32> -> vector<1x32xf32>
    %381 = arith.addf %380, %31 : vector<1x32xf32>
    %cst_163 = arith.constant dense<0.000000e+00> : vector<1xf32>
    %382 = vector.multi_reduction <add>, %381, %cst_163 [1] : vector<1x32xf32> to vector<1xf32>
    %383 = vector.shape_cast %382 : vector<1xf32> to vector<1x1xf32>
    %cst_164 = arith.constant 3.200000e+01 : f32
    %384 = vector.broadcast %cst_164 : f32 to vector<1x1xf32>
    %385 = arith.divf %383, %384 : vector<1x1xf32>
    %386 = vector.broadcast %385 : vector<1x1xf32> to vector<1x32xf32>
    %387 = arith.subf %381, %386 : vector<1x32xf32>
    %388 = arith.mulf %387, %387 : vector<1x32xf32>
    %cst_165 = arith.constant dense<0.000000e+00> : vector<1xf32>
    %389 = vector.multi_reduction <add>, %388, %cst_165 [1] : vector<1x32xf32> to vector<1xf32>
    %390 = vector.shape_cast %389 : vector<1xf32> to vector<1x1xf32>
    %cst_166 = arith.constant 3.200000e+01 : f32
    %391 = vector.broadcast %cst_166 : f32 to vector<1x1xf32>
    %392 = arith.divf %390, %391 : vector<1x1xf32>
    %393 = vector.broadcast %385 : vector<1x1xf32> to vector<1x32xf32>
    %394 = arith.subf %381, %393 : vector<1x32xf32>
    %cst_167 = arith.constant 9.99999974E-6 : f32
    %395 = vector.broadcast %cst_167 : f32 to vector<1x1xf32>
    %396 = arith.addf %392, %395 : vector<1x1xf32>
    %397 = math.rsqrt %396 : vector<1x1xf32>
    %398 = vector.broadcast %397 : vector<1x1xf32> to vector<1x32xf32>
    %399 = arith.mulf %394, %398 : vector<1x32xf32>
    %400 = arith.mulf %399, %33 : vector<1x32xf32>
    %401 = arith.addf %400, %30 : vector<1x32xf32>
    %402 = arith.truncf %401 : vector<1x32xf32> to vector<1x32xbf16>
    %cst_168 = arith.constant dense<0.000000e+00> : vector<1x32xf32>
    %403 = tpu.matmul %402, %35, %cst_168 {dimension_numbers = #tpu.dot_dimension_numbers<[1], [0], [0], [1], [0, 0, 1, 1], [], []>} : vector<1x32xbf16>, vector<32x32xbf16>, vector<1x32xf32> -> vector<1x32xf32>
    %404 = vector.broadcast %403 : vector<1x32xf32> to vector<16x32xf32>
    %405 = arith.addf %375, %404 : vector<16x32xf32>
    %406 = vector.broadcast %32 : vector<1x32xf32> to vector<16x32xf32>
    %407 = arith.addf %405, %406 : vector<16x32xf32>
    %c0_169 = arith.constant 0 : index
    %c0_170 = arith.constant 0 : index
    %408 = vector.load %arg40[%c0_169, %c0_170] : memref<16x32xf32, #tpu.memory_space<vmem>>, vector<16x32xf32>
    tpu.vector_store %arg40[%c0_169, %c0_170], %407 {strides = array<i32>} : memref<16x32xf32, #tpu.memory_space<vmem>>, vector<16x32xf32>,
    return
  }
}

</mosaic_0001>

<llo_original>
// kernel: encoder_forward.1
$region0: #{encoder_forward.1}
  #allocation0 [shape = 'u32[]', space=smem, size = 0x4, offset = 0x4, fixed_abs, tag = 'smem constant byte address 0x4 - core index']
  #allocation1 [shape = 'u32[144,128]{1,0:T(1,128)}', space=vmem, size = 0x12000, scoped, tag = 'internal scratch']
  %s0 = inlined_call_operand.smem [shape: u32[43], index: -1, kind: input, shape index: {}]
  %s1 = sld [smem:[%s0]]
  %s2 = scalar_lea.smem %s0, 1
  %s3 = sld [smem:[%s2]]
  %s4 = scalar_lea.smem %s0, 2
  %s5 = sld [smem:[%s4]]
  %s6 = scalar_lea.smem %s0, 3
  %s7 = sld [smem:[%s6]]
  %s8 = scalar_lea.smem %s0, 4
  %s9 = sld [smem:[%s8]]
  %s10 = scalar_lea.smem %s0, 5
  %s11 = sld [smem:[%s10]]
  %s12 = scalar_lea.smem %s0, 6
  %s13 = sld [smem:[%s12]]
  %s14 = scalar_lea.smem %s0, 7
  %s15 = sld [smem:[%s14]]
  %s16 = scalar_lea.smem %s0, 8
  %s17 = sld [smem:[%s16]]
  %s18 = scalar_lea.smem %s0, 9
  %s19 = sld [smem:[%s18]]
  %s20 = scalar_lea.smem %s0, 10
  %s21 = sld [smem:[%s20]]
  %s22 = scalar_lea.smem %s0, 11
  %s23 = sld [smem:[%s22]]
  %s24 = scalar_lea.smem %s0, 12
  %s25 = sld [smem:[%s24]]
  %s26 = scalar_lea.smem %s0, 13
  %s27 = sld [smem:[%s26]]
  %s28 = scalar_lea.smem %s0, 14
  %s29 = sld [smem:[%s28]]
  %s30 = scalar_lea.smem %s0, 15
  %s31 = sld [smem:[%s30]]
  %s32 = scalar_lea.smem %s0, 16
  %s33 = sld [smem:[%s32]]
  %s34 = scalar_lea.smem %s0, 17
  %s35 = sld [smem:[%s34]]
  %s36 = scalar_lea.smem %s0, 18
  %s37 = sld [smem:[%s36]]
  %s38 = scalar_lea.smem %s0, 19
  %s39 = sld [smem:[%s38]]
  %s40 = scalar_lea.smem %s0, 20
  %s41 = sld [smem:[%s40]]
  %s42 = scalar_lea.smem %s0, 21
  %s43 = sld [smem:[%s42]]
  %s44 = scalar_lea.smem %s0, 22
  %s45 = sld [smem:[%s44]]
  %s46 = scalar_lea.smem %s0, 23
  %s47 = sld [smem:[%s46]]
  %s48 = scalar_lea.smem %s0, 24
  %s49 = sld [smem:[%s48]]
  %s50 = scalar_lea.smem %s0, 25
  %s51 = sld [smem:[%s50]]
  %s52 = scalar_lea.smem %s0, 26
  %s53 = sld [smem:[%s52]]
  %s54 = scalar_lea.smem %s0, 27
  %s55 = sld [smem:[%s54]]
  %s56 = scalar_lea.smem %s0, 28
  %s57 = sld [smem:[%s56]]
  %s58 = scalar_lea.smem %s0, 29
  %s59 = sld [smem:[%s58]]
  %s60 = scalar_lea.smem %s0, 30
  %s61 = sld [smem:[%s60]]
  %s62 = scalar_lea.smem %s0, 31
  %s63 = sld [smem:[%s62]]
  %s64 = scalar_lea.smem %s0, 32
  %s65 = sld [smem:[%s64]]
  %s66 = scalar_lea.smem %s0, 33
  %s67 = sld [smem:[%s66]]
  %s68 = scalar_lea.smem %s0, 34
  %s69 = sld [smem:[%s68]]
  %s70 = scalar_lea.smem %s0, 35
  %s71 = sld [smem:[%s70]]
  %s72 = scalar_lea.smem %s0, 36
  %s73 = sld [smem:[%s72]]
  %s74 = scalar_lea.smem %s0, 37
  %s75 = sld [smem:[%s74]]
  %s76 = scalar_lea.smem %s0, 38
  %s77 = sld [smem:[%s76]]
  %s78 = scalar_lea.smem %s0, 39
  %s79 = sld [smem:[%s78]]
  %s80 = scalar_lea.smem %s0, 40
  %s81 = sld [smem:[%s80]]
  %s82 = scalar_lea.smem %s0, 41
  %s83 = sld [smem:[%s82]]
  %s84 = scalar_lea.smem %s0, 42
  %s85 = sld [smem:[%s84]]
  %86 = xla_tuple %s79, %s81, %s83, %s85
  %s87 = sld [smem:[#allocation0]]
  $region190: #{encoder_forward.1} parent=0
    _
  %s89 = ssub.s32 1, %s87
  %s90 = scalar_select 0, %s89, %s87
  $region1: #{encoder_forward.1} parent=0
    #allocation2 [shape = 'u8[8192]{0}', space=vmem, size = 0x2000, scoped, tag = 'output window, operand 0, single buffered']
    #allocation3 [shape = 's32[1]{0}', space=sflag, size = 0x4, scoped, tag = 'scoped memory for encoder_forward.1']
    #allocation4 [shape = 'u8[8192]{0}', space=vmem, size = 0x2000, scoped, tag = 'output window, operand 1, single buffered']
    #allocation5 [shape = 's32[1]{0}', space=sflag, size = 0x4, scoped, tag = 'scoped memory for encoder_forward.1']
    #allocation6 [shape = 'u8[8192]{0}', space=vmem, size = 0x2000, scoped, tag = 'output window, operand 2, single buffered']
    #allocation7 [shape = 'u8[8192]{0}', space=vmem, size = 0x2000, scoped, tag = 'output window, operand 3, single buffered']
    #allocation8 [shape = 's32[1]{0}', space=sflag, size = 0x4, scoped, tag = 'scoped memory for encoder_forward.1']
    %91 = vsyncpa [#allocation3], 0
    %92 = vsyncpa [#allocation5], 0
    %93 = vsyncpa [#allocation8], 0
    // Predicated region
    $region2: #{encoder_forward.1} parent=1 // pred_check
      _
    $region3: #{encoder_forward.1} parent=1 // pred_check_branch
      %95 = sbr.rel (0) target = $region5
    $region4: #{encoder_forward.1} parent=1 // pred_region
      _
    $region5: #{encoder_forward.1} parent=1 // pred_fallthru
      _
    // Predicated region
    $region6: #{encoder_forward.1} parent=1 // pred_check
      _
    $region7: #{encoder_forward.1} parent=1 // pred_check_branch
      %97 = sbr.rel (0) target = $region9
    $region8: #{encoder_forward.1} parent=1 // pred_region
      _
    $region9: #{encoder_forward.1} parent=1 // pred_fallthru
      _
    // Predicated region
    $region10: #{encoder_forward.1} parent=1 // pred_check
      _
    $region11: #{encoder_forward.1} parent=1 // pred_check_branch
      %99 = sbr.rel (0) target = $region13
    $region12: #{encoder_forward.1} parent=1 // pred_region
      _
    $region13: #{encoder_forward.1} parent=1 // pred_fallthru
      _
    // Predicated region
    $region14: #{encoder_forward.1} parent=1 // pred_check
      _
    $region15: #{encoder_forward.1} parent=1 // pred_check_branch
      %101 = sbr.rel (0) target = $region17
    $region16: #{encoder_forward.1} parent=1 // pred_region
      _
    $region17: #{encoder_forward.1} parent=1 // pred_fallthru
      _
    // Predicated region
    $region18: #{encoder_forward.1} parent=1 // pred_check
      _
    $region19: #{encoder_forward.1} parent=1 // pred_check_branch
      %103 = sbr.rel (0) target = $region21
    $region20: #{encoder_forward.1} parent=1 // pred_region
      _
    $region21: #{encoder_forward.1} parent=1 // pred_fallthru
      _
    // Predicated region
    $region22: #{encoder_forward.1} parent=1 // pred_check
      _
    $region23: #{encoder_forward.1} parent=1 // pred_check_branch
      %105 = sbr.rel (0) target = $region25
    $region24: #{encoder_forward.1} parent=1 // pred_region
      _
    $region25: #{encoder_forward.1} parent=1 // pred_fallthru
      _
    // Predicated region
    $region26: #{encoder_forward.1} parent=1 // pred_check
      _
    $region27: #{encoder_forward.1} parent=1 // pred_check_branch
      %107 = sbr.rel (0) target = $region29
    $region28: #{encoder_forward.1} parent=1 // pred_region
      _
    $region29: #{encoder_forward.1} parent=1 // pred_fallthru
      _
    // Predicated region
    $region30: #{encoder_forward.1} parent=1 // pred_check
      _
    $region31: #{encoder_forward.1} parent=1 // pred_check_branch
      %109 = sbr.rel (0) target = $region33
    $region32: #{encoder_forward.1} parent=1 // pred_region
      _
    $region33: #{encoder_forward.1} parent=1 // pred_fallthru
      _
    // Predicated region
    $region34: #{encoder_forward.1} parent=1 // pred_check
      _
    $region35: #{encoder_forward.1} parent=1 // pred_check_branch
      %111 = sbr.rel (0) target = $region37
    $region36: #{encoder_forward.1} parent=1 // pred_region
      _
    $region37: #{encoder_forward.1} parent=1 // pred_fallthru
      _
    // Predicated region
    $region38: #{encoder_forward.1} parent=1 // pred_check
      _
    $region39: #{encoder_forward.1} parent=1 // pred_check_branch
      %113 = sbr.rel (0) target = $region41
    $region40: #{encoder_forward.1} parent=1 // pred_region
      _
    $region41: #{encoder_forward.1} parent=1 // pred_fallthru
      _
    // Predicated region
    $region42: #{encoder_forward.1} parent=1 // pred_check
      _
    $region43: #{encoder_forward.1} parent=1 // pred_check_branch
      %115 = sbr.rel (0) target = $region45
    $region44: #{encoder_forward.1} parent=1 // pred_region
      _
    $region45: #{encoder_forward.1} parent=1 // pred_fallthru
      _
    // Predicated region
    $region46: #{encoder_forward.1} parent=1 // pred_check
      _
    $region47: #{encoder_forward.1} parent=1 // pred_check_branch
      %117 = sbr.rel (0) target = $region49
    $region48: #{encoder_forward.1} parent=1 // pred_region
      _
    $region49: #{encoder_forward.1} parent=1 // pred_fallthru
      _
    // Predicated region
    $region50: #{encoder_forward.1} parent=1 // pred_check
      _
    $region51: #{encoder_forward.1} parent=1 // pred_check_branch
      %119 = sbr.rel (0) target = $region53
    $region52: #{encoder_forward.1} parent=1 // pred_region
      _
    $region53: #{encoder_forward.1} parent=1 // pred_fallthru
      _
    // Predicated region
    $region54: #{encoder_forward.1} parent=1 // pred_check
      _
    $region55: #{encoder_forward.1} parent=1 // pred_check_branch
      %121 = sbr.rel (0) target = $region57
    $region56: #{encoder_forward.1} parent=1 // pred_region
      _
    $region57: #{encoder_forward.1} parent=1 // pred_fallthru
      _
    // Predicated region
    $region58: #{encoder_forward.1} parent=1 // pred_check
      _
    $region59: #{encoder_forward.1} parent=1 // pred_check_branch
      %123 = sbr.rel (0) target = $region61
    $region60: #{encoder_forward.1} parent=1 // pred_region
      _
    $region61: #{encoder_forward.1} parent=1 // pred_fallthru
      _
    // Predicated region
    $region62: #{encoder_forward.1} parent=1 // pred_check
      _
    $region63: #{encoder_forward.1} parent=1 // pred_check_branch
      %125 = sbr.rel (0) target = $region65
    $region64: #{encoder_forward.1} parent=1 // pred_region
      _
    $region65: #{encoder_forward.1} parent=1 // pred_fallthru
      _
    // Predicated region
    $region66: #{encoder_forward.1} parent=1 // pred_check
      _
    $region67: #{encoder_forward.1} parent=1 // pred_check_branch
      %127 = sbr.rel (0) target = $region69
    $region68: #{encoder_forward.1} parent=1 // pred_region
      _
    $region69: #{encoder_forward.1} parent=1 // pred_fallthru
      _
    // Predicated region
    $region70: #{encoder_forward.1} parent=1 // pred_check
      _
    $region71: #{encoder_forward.1} parent=1 // pred_check_branch
      %129 = sbr.rel (0) target = $region73
    $region72: #{encoder_forward.1} parent=1 // pred_region
      _
    $region73: #{encoder_forward.1} parent=1 // pred_fallthru
      _
    // Predicated region
    $region74: #{encoder_forward.1} parent=1 // pred_check
      _
    $region75: #{encoder_forward.1} parent=1 // pred_check_branch
      %131 = sbr.rel (0) target = $region77
    $region76: #{encoder_forward.1} parent=1 // pred_region
      _
    $region77: #{encoder_forward.1} parent=1 // pred_fallthru
      _
    // Predicated region
    $region78: #{encoder_forward.1} parent=1 // pred_check
      _
    $region79: #{encoder_forward.1} parent=1 // pred_check_branch
      %133 = sbr.rel (0) target = $region81
    $region80: #{encoder_forward.1} parent=1 // pred_region
      _
    $region81: #{encoder_forward.1} parent=1 // pred_fallthru
      _
    // Predicated region
    $region82: #{encoder_forward.1} parent=1 // pred_check
      _
    $region83: #{encoder_forward.1} parent=1 // pred_check_branch
      %135 = sbr.rel (0) target = $region85
    $region84: #{encoder_forward.1} parent=1 // pred_region
      _
    $region85: #{encoder_forward.1} parent=1 // pred_fallthru
      _
    // Predicated region
    $region86: #{encoder_forward.1} parent=1 // pred_check
      _
    $region87: #{encoder_forward.1} parent=1 // pred_check_branch
      %137 = sbr.rel (0) target = $region89
    $region88: #{encoder_forward.1} parent=1 // pred_region
      _
    $region89: #{encoder_forward.1} parent=1 // pred_fallthru
      _
    // Predicated region
    $region90: #{encoder_forward.1} parent=1 // pred_check
      _
    $region91: #{encoder_forward.1} parent=1 // pred_check_branch
      %139 = sbr.rel (0) target = $region93
    $region92: #{encoder_forward.1} parent=1 // pred_region
      _
    $region93: #{encoder_forward.1} parent=1 // pred_fallthru
      _
    // Predicated region
    $region94: #{encoder_forward.1} parent=1 // pred_check
      _
    $region95: #{encoder_forward.1} parent=1 // pred_check_branch
      %141 = sbr.rel (0) target = $region97
    $region96: #{encoder_forward.1} parent=1 // pred_region
      _
    $region97: #{encoder_forward.1} parent=1 // pred_fallthru
      _
    // Predicated region
    $region98: #{encoder_forward.1} parent=1 // pred_check
      _
    $region99: #{encoder_forward.1} parent=1 // pred_check_branch
      %143 = sbr.rel (0) target = $region101
    $region100: #{encoder_forward.1} parent=1 // pred_region
      _
    $region101: #{encoder_forward.1} parent=1 // pred_fallthru
      _
    // Predicated region
    $region102: #{encoder_forward.1} parent=1 // pred_check
      _
    $region103: #{encoder_forward.1} parent=1 // pred_check_branch
      %145 = sbr.rel (0) target = $region105
    $region104: #{encoder_forward.1} parent=1 // pred_region
      _
    $region105: #{encoder_forward.1} parent=1 // pred_fallthru
      _
    // Predicated region
    $region106: #{encoder_forward.1} parent=1 // pred_check
      _
    $region107: #{encoder_forward.1} parent=1 // pred_check_branch
      %147 = sbr.rel (0) target = $region109
    $region108: #{encoder_forward.1} parent=1 // pred_region
      _
    $region109: #{encoder_forward.1} parent=1 // pred_fallthru
      _
    // Predicated region
    $region110: #{encoder_forward.1} parent=1 // pred_check
      _
    $region111: #{encoder_forward.1} parent=1 // pred_check_branch
      %149 = sbr.rel (0) target = $region113
    $region112: #{encoder_forward.1} parent=1 // pred_region
      _
    $region113: #{encoder_forward.1} parent=1 // pred_fallthru
      _
    // Predicated region
    $region114: #{encoder_forward.1} parent=1 // pred_check
      _
    $region115: #{encoder_forward.1} parent=1 // pred_check_branch
      %151 = sbr.rel (0) target = $region117
    $region116: #{encoder_forward.1} parent=1 // pred_region
      _
    $region117: #{encoder_forward.1} parent=1 // pred_fallthru
      _
    // Predicated region
    $region118: #{encoder_forward.1} parent=1 // pred_check
      _
    $region119: #{encoder_forward.1} parent=1 // pred_check_branch
      %153 = sbr.rel (0) target = $region121
    $region120: #{encoder_forward.1} parent=1 // pred_region
      _
    $region121: #{encoder_forward.1} parent=1 // pred_fallthru
      _
    // Predicated region
    $region122: #{encoder_forward.1} parent=1 // pred_check
      _
    $region123: #{encoder_forward.1} parent=1 // pred_check_branch
      %155 = sbr.rel (0) target = $region125
    $region124: #{encoder_forward.1} parent=1 // pred_region
      _
    $region125: #{encoder_forward.1} parent=1 // pred_fallthru
      _
    // Predicated region
    $region126: #{encoder_forward.1} parent=1 // pred_check
      _
    $region127: #{encoder_forward.1} parent=1 // pred_check_branch
      %157 = sbr.rel (0) target = $region129
    $region128: #{encoder_forward.1} parent=1 // pred_region
      _
    $region129: #{encoder_forward.1} parent=1 // pred_fallthru
      _
    // Predicated region
    $region130: #{encoder_forward.1} parent=1 // pred_check
      _
    $region131: #{encoder_forward.1} parent=1 // pred_check_branch
      %159 = sbr.rel (0) target = $region133
    $region132: #{encoder_forward.1} parent=1 // pred_region
      _
    $region133: #{encoder_forward.1} parent=1 // pred_fallthru
      _
    // Predicated region
    $region134: #{encoder_forward.1} parent=1 // pred_check
      _
    $region135: #{encoder_forward.1} parent=1 // pred_check_branch
      %161 = sbr.rel (0) target = $region137
    $region136: #{encoder_forward.1} parent=1 // pred_region
      _
    $region137: #{encoder_forward.1} parent=1 // pred_fallthru
      _
    // Predicated region
    $region138: #{encoder_forward.1} parent=1 // pred_check
      _
    $region139: #{encoder_forward.1} parent=1 // pred_check_branch
      %163 = sbr.rel (0) target = $region141
    $region140: #{encoder_forward.1} parent=1 // pred_region
      _
    $region141: #{encoder_forward.1} parent=1 // pred_fallthru
      _
    // Predicated region
    $region142: #{encoder_forward.1} parent=1 // pred_check
      _
    $region143: #{encoder_forward.1} parent=1 // pred_check_branch
      %165 = sbr.rel (0) target = $region145
    $region144: #{encoder_forward.1} parent=1 // pred_region
      _
    $region145: #{encoder_forward.1} parent=1 // pred_fallthru
      _
    // Predicated region
    $region146: #{encoder_forward.1} parent=1 // pred_check
      _
    $region147: #{encoder_forward.1} parent=1 // pred_check_branch
      %167 = sbr.rel (0) target = $region149
    $region148: #{encoder_forward.1} parent=1 // pred_region
      _
    $region149: #{encoder_forward.1} parent=1 // pred_fallthru
      _
    // Predicated region
    $region150: #{encoder_forward.1} parent=1 // pred_check
      _
    $region151: #{encoder_forward.1} parent=1 // pred_check_branch
      %169 = sbr.rel (0) target = $region153
    $region152: #{encoder_forward.1} parent=1 // pred_region
      _
    $region153: #{encoder_forward.1} parent=1 // pred_fallthru
      _
    // Predicated region
    $region154: #{encoder_forward.1} parent=1 // pred_check
      _
    $region155: #{encoder_forward.1} parent=1 // pred_check_branch
      %171 = sbr.rel (0) target = $region157
    $region156: #{encoder_forward.1} parent=1 // pred_region
      _
    $region157: #{encoder_forward.1} parent=1 // pred_fallthru
      _
    %v173 = vld [vmem:[%s7] sm:$0x1]
    %v174 = vld [vmem:[%s9] sm:$0x1]
    %v175 = vld [vmem:[%s11] sm:$0xf]
    %v176 = vld [vmem:[%s13] sm:$0xf]
    %v177 = vld [vmem:[%s13 + $0x4] sm:$0xf]
    %v178 = vld [vmem:[%s13 + $0x8] sm:$0xf]
    %v179 = vld [vmem:[%s13 + $0xc] sm:$0xf]
    %v180 = vld [vmem:[%s15] sm:$0x1]
    %v181 = vld [vmem:[%s17] sm:$0x1]
    %v182 = vld [vmem:[%s19] sm:$0x1]
    %v183 = vld [vmem:[%s21] sm:$0x1]
    %v184 = vld [vmem:[%s23] sm:$0x1]
    %v185 = vld [vmem:[%s25] sm:$0xf]
    %v186 = vld [vmem:[%s25 + $0x4] sm:$0xf]
    %v187 = vld [vmem:[%s25 + $0x8] sm:$0xf]
    %v188 = vld [vmem:[%s25 + $0xc] sm:$0xf]
    %v189 = vld [vmem:[%s27] sm:$0x1]
    %v190 = vld [vmem:[%s29] sm:$0x1]
    %v191 = vld [vmem:[%s31] sm:$0xf]
    %v192 = vld [vmem:[%s33] sm:$0xf]
    %v193 = vld [vmem:[%s33 + $0x4] sm:$0xf]
    %v194 = vld [vmem:[%s33 + $0x8] sm:$0xf]
    %v195 = vld [vmem:[%s33 + $0xc] sm:$0xf]
    %v196 = vld [vmem:[%s35] sm:$0x1]
    %v197 = vld [vmem:[%s37] sm:$0x1]
    %v198 = vld [vmem:[%s39] sm:$0x1]
    %v199 = vld [vmem:[%s41] sm:$0x1]
    %v200 = vld [vmem:[%s43] sm:$0x1]
    %v201 = vld [vmem:[%s45] sm:$0xf]
    %v202 = vld [vmem:[%s45 + $0x4] sm:$0xf]
    %v203 = vld [vmem:[%s45 + $0x8] sm:$0xf]
    %v204 = vld [vmem:[%s45 + $0xc] sm:$0xf]
    %v205 = vld [vmem:[%s47] sm:$0x1]
    %v206 = vld [vmem:[%s49] sm:$0x1]
    %v207 = vld [vmem:[%s51] sm:$0xf]
    %v208 = vld [vmem:[%s53] sm:$0xf]
    %v209 = vld [vmem:[%s53 + $0x4] sm:$0xf]
    %v210 = vld [vmem:[%s53 + $0x8] sm:$0xf]
    %v211 = vld [vmem:[%s53 + $0xc] sm:$0xf]
    %v212 = vld [vmem:[%s55] sm:$0x1]
    %v213 = vld [vmem:[%s57] sm:$0x1]
    %v214 = vld [vmem:[%s59] sm:$0x1]
    %v215 = vld [vmem:[%s61] sm:$0x1]
    %v216 = vld [vmem:[%s63] sm:$0xf]
    %v217 = vld [vmem:[%s63 + $0x4] sm:$0xf]
    %v218 = vld [vmem:[%s63 + $0x8] sm:$0xf]
    %v219 = vld [vmem:[%s63 + $0xc] sm:$0xf]
    %v220 = vld [vmem:[%s65] sm:$0xf]
    %v221 = vld [vmem:[%s65 + $0x4] sm:$0xf]
    %v222 = vld [vmem:[%s65 + $0x8] sm:$0xf]
    %v223 = vld [vmem:[%s65 + $0xc] sm:$0xf]
    %v224 = vld [vmem:[%s67] sm:$0x1]
    %v225 = vld [vmem:[%s69] sm:$0x1]
    %v226 = vld [vmem:[%s71] sm:$0x1]
    %v227 = vld [vmem:[%s73] sm:$0x1]
    %v228 = vld [vmem:[%s75] sm:$0xf]
    %v229 = vld [vmem:[%s75 + $0x4] sm:$0xf]
    %v230 = vld [vmem:[%s75 + $0x8] sm:$0xf]
    %v231 = vld [vmem:[%s75 + $0xc] sm:$0xf]
    %v232 = vld [vmem:[%s77] sm:$0xf]
    %v233 = vld [vmem:[%s77 + $0x4] sm:$0xf]
    %v234 = vld [vmem:[%s77 + $0x8] sm:$0xf]
    %v235 = vld [vmem:[%s77 + $0xc] sm:$0xf]
    %v236 = vld [vmem:[%s1] sm:$0xff]
    %v237 = vld [vmem:[%s1 + $0x8] sm:$0xff]
    %v238 = vld [vmem:[%s3] sm:$0xf]
    %v239 = vld [vmem:[%s3 + $0x4] sm:$0xf]
    %v240 = vld [vmem:[%s5] sm:$0xff]
    %v241 = vld [vmem:[%s5 + $0x8] sm:$0xff]
    %v242 = vpack.c.bf16 %v237, %v236
    %v244 = vlaneseq
    %v245 = vshrl.u32 %v244, 7
    %v246 = vsub.s32 0, %v245
    %v247 = vrot.slane %v173, %v246
    %vm249 = vcmask 64512
    %v251 = vsel %vm249, %v242, 0
    %vm253 = vcmask 1043456
    %v255 = vsel %vm253, %v175, 0
    %257 = vmatprep.subr.bf16.mxu0 0
    %258 = vmatpush1.bf16.msra.mxu0 %v255
    %259 = vmatprep.subr.bf16.mxu0 0
    %260 = vmatpush1.bf16.msra.mxu0 0
    %261 = vmatprep.subr.bf16.mxu0 0
    %262 = vmatpush1.bf16.msra.mxu0 0
    %263 = vmatprep.subr.bf16.mxu0 0
    %264 = vmatpush1.bf16.msra.mxu0 0
    %265 = vmatprep.subr.bf16.mxu0 0
    %266 = vmatpush1.bf16.msra.mxu0 0
    %267 = vmatprep.subr.bf16.mxu0 0
    %268 = vmatpush1.bf16.msra.mxu0 0
    %269 = vmatprep.subr.bf16.mxu0 0
    %270 = vmatpush1.bf16.msra.mxu0 0
    %271 = vmatprep.subr.bf16.mxu0 0
    %272 = vmatpush1.bf16.msra.mxu0 0
    %273 = vmatprep.subr.bf16.mxu0 0
    %274 = vmatpush1.bf16.msra.mxu0 0
    %275 = vmatprep.subr.bf16.mxu0 0
    %276 = vmatpush1.bf16.msra.mxu0 0
    %277 = vmatprep.subr.bf16.mxu0 0
    %278 = vmatpush1.bf16.msra.mxu0 0
    %279 = vmatprep.subr.bf16.mxu0 0
    %280 = vmatpush1.bf16.msra.mxu0 0
    %281 = vmatprep.subr.bf16.mxu0 0
    %282 = vmatpush1.bf16.msra.mxu0 0
    %283 = vmatprep.subr.bf16.mxu0 0
    %284 = vmatpush1.bf16.msra.mxu0 0
    %285 = vmatprep.subr.bf16.mxu0 0
    %286 = vmatpush1.bf16.msra.mxu0 0
    %287 = vmatprep.subr.bf16.mxu0 0
    %288 = vmatpush1.bf16.msra.mxu0 0
    %289 = vmatprep.mubr.bf16.mxu0 0
    %290 = vmatmul.mubr.bf16.gmra.mrb[0].mxu0 %v251
    %v291 = vpop.f32.mrb[0].mxu0
    %v292 = vadd.f32 %v247, %v291
    %v293 = vpop.f32.mrb[0].mxu0
    %v294 = vpop.f32.mrb[0].mxu0
    %v295 = vadd.f32 %v247, %v294
    %v296 = vpop.f32.mrb[0].mxu0
    %297 = vdwg.mxu0
    %v298 = vmax.f32 %v292, 0.0
    %v299 = vmax.f32 %v295, 0.0
    %v300 = vpack.c.bf16 %v299, %v298
    %v302 = vlaneseq
    %v303 = vshrl.u32 %v302, 7
    %v304 = vsub.s32 0, %v303
    %v305 = vrot.slane %v174, %v304
    %v311 = vunpack.c.l.b16 %v176
    %v312 = vunpack.c.l.b16 %v177
    %v313 = vunpack.c.l.b16 %v178
    %v314 = vunpack.c.l.b16 %v179
    %v315 = vpack.c.b16 %v312, %v311
    %v316 = vpack.c.b16 %v314, %v313
    %vm319 = vcmask 261120
    %v321 = vsel %vm319, %v300, 0
    %323 = vmatprep.subr.bf16.mxu0 0
    %324 = vmatpush1.bf16.msra.mxu0 %v315
    %325 = vmatprep.subr.bf16.mxu0 0
    %326 = vmatpush1.bf16.msra.mxu0 %v316
    %327 = vmatprep.subr.bf16.mxu0 0
    %328 = vmatpush1.bf16.msra.mxu0 0
    %329 = vmatprep.subr.bf16.mxu0 0
    %330 = vmatpush1.bf16.msra.mxu0 0
    %331 = vmatprep.subr.bf16.mxu0 0
    %332 = vmatpush1.bf16.msra.mxu0 0
    %333 = vmatprep.subr.bf16.mxu0 0
    %334 = vmatpush1.bf16.msra.mxu0 0
    %335 = vmatprep.subr.bf16.mxu0 0
    %336 = vmatpush1.bf16.msra.mxu0 0
    %337 = vmatprep.subr.bf16.mxu0 0
    %338 = vmatpush1.bf16.msra.mxu0 0
    %339 = vmatprep.subr.bf16.mxu0 0
    %340 = vmatpush1.bf16.msra.mxu0 0
    %341 = vmatprep.subr.bf16.mxu0 0
    %342 = vmatpush1.bf16.msra.mxu0 0
    %343 = vmatprep.subr.bf16.mxu0 0
    %344 = vmatpush1.bf16.msra.mxu0 0
    %345 = vmatprep.subr.bf16.mxu0 0
    %346 = vmatpush1.bf16.msra.mxu0 0
    %347 = vmatprep.subr.bf16.mxu0 0
    %348 = vmatpush1.bf16.msra.mxu0 0
    %349 = vmatprep.subr.bf16.mxu0 0
    %350 = vmatpush1.bf16.msra.mxu0 0
    %351 = vmatprep.subr.bf16.mxu0 0
    %352 = vmatpush1.bf16.msra.mxu0 0
    %353 = vmatprep.subr.bf16.mxu0 0
    %354 = vmatpush1.bf16.msra.mxu0 0
    %355 = vmatprep.mubr.bf16.mxu0 0
    %356 = vmatmul.mubr.bf16.gmra.mrb[0].mxu0 %v321
    %v357 = vpop.f32.mrb[0].mxu0
    %v358 = vadd.f32 %v305, %v357
    %v359 = vpop.f32.mrb[0].mxu0
    %v360 = vpop.f32.mrb[0].mxu0
    %v361 = vadd.f32 %v305, %v360
    %v362 = vpop.f32.mrb[0].mxu0
    %363 = vdwg.mxu0
    %v364 = vsel %vm319, %v358, 0.0
    %v365 = vsel %vm319, %v361, 0.0
    %v366 = vadd.f32 %v364, %v365
    %v367 = vrot.slane %v366, 4
    %v368 = vadd.f32 %v366, %v367
    %v369 = vrot.slane %v368, 2
    %v370 = vadd.f32 %v368, %v369
    %v371 = vrot.slane %v370, 1
    %v372 = vadd.f32 %v370, %v371
    %v373 = vpack.c.bf16 %v372, %v372
    %v378 = vunpack.c.l.b16 %v216
    %v379 = vunpack.c.l.b16 %v217
    %v380 = vunpack.c.l.b16 %v218
    %v381 = vunpack.c.l.b16 %v219
    %v382 = vpack.c.b16 %v379, %v378
    %v383 = vpack.c.b16 %v381, %v380
    %v387 = vsel %vm319, %v373, 0
    %389 = vmatprep.subr.bf16.mxu0 0
    %390 = vmatpush1.bf16.msra.mxu0 %v382
    %391 = vmatprep.subr.bf16.mxu0 0
    %392 = vmatpush1.bf16.msra.mxu0 %v383
    %393 = vmatprep.subr.bf16.mxu0 0
    %394 = vmatpush1.bf16.msra.mxu0 0
    %395 = vmatprep.subr.bf16.mxu0 0
    %396 = vmatpush1.bf16.msra.mxu0 0
    %397 = vmatprep.subr.bf16.mxu0 0
    %398 = vmatpush1.bf16.msra.mxu0 0
    %399 = vmatprep.subr.bf16.mxu0 0
    %400 = vmatpush1.bf16.msra.mxu0 0
    %401 = vmatprep.subr.bf16.mxu0 0
    %402 = vmatpush1.bf16.msra.mxu0 0
    %403 = vmatprep.subr.bf16.mxu0 0
    %404 = vmatpush1.bf16.msra.mxu0 0
    %405 = vmatprep.subr.bf16.mxu0 0
    %406 = vmatpush1.bf16.msra.mxu0 0
    %407 = vmatprep.subr.bf16.mxu0 0
    %408 = vmatpush1.bf16.msra.mxu0 0
    %409 = vmatprep.subr.bf16.mxu0 0
    %410 = vmatpush1.bf16.msra.mxu0 0
    %411 = vmatprep.subr.bf16.mxu0 0
    %412 = vmatpush1.bf16.msra.mxu0 0
    %413 = vmatprep.subr.bf16.mxu0 0
    %414 = vmatpush1.bf16.msra.mxu0 0
    %415 = vmatprep.subr.bf16.mxu0 0
    %416 = vmatpush1.bf16.msra.mxu0 0
    %417 = vmatprep.subr.bf16.mxu0 0
    %418 = vmatpush1.bf16.msra.mxu0 0
    %419 = vmatprep.subr.bf16.mxu0 0
    %420 = vmatpush1.bf16.msra.mxu0 0
    %421 = vmatprep.mubr.bf16.mxu0 0
    %422 = vmatmul.mubr.bf16.gmra.mrb[0].mxu0 %v387
    %v423 = vpop.f32.mrb[0].mxu0
    %v424 = vadd.f32 %v213, %v423
    %v425 = vpop.f32.mrb[0].mxu0
    %v426 = vpop.f32.mrb[0].mxu0
    %v427 = vpop.f32.mrb[0].mxu0
    %428 = vdwg.mxu0
    %vm429 = vcmask 253952
    %v430 = vsel %vm429, %v424, 0.0
    %431 = vadd.xlane.f32.xlu0 %v430
    %v432 = vpop.xlane.xlu0 %431
    %v433 = vrcp.pop 32.0
    %v434 = vmul.f32 %v432, %v433
    %v435 = vsub.f32 %v424, %v434
    %v436 = vmul.f32 %v435, %v435
    %v437 = vsel %vm429, %v436, 0.0
    %438 = vadd.xlane.f32.xlu0 %v437
    %v439 = vpop.xlane.xlu0 %438
    %v440 = vmul.f32 %v439, %v433
    %v441 = vadd.f32 %v440, 1e-05
    %v442 = vrsqrt.pop %v441
    %v443 = vmul.f32 %v435, %v442
    %v444 = vmul.f32 %v443, %v215
    %v445 = vadd.f32 %v444, %v212
    %v446 = vpack.c.bf16 %v445, %v445
    %v451 = vunpack.c.l.b16 %v220
    %v452 = vunpack.c.l.b16 %v221
    %v453 = vunpack.c.l.b16 %v222
    %v454 = vunpack.c.l.b16 %v223
    %v455 = vpack.c.b16 %v452, %v451
    %v456 = vpack.c.b16 %v454, %v453
    %v460 = vsel %vm319, %v446, 0
    %462 = vmatprep.subr.bf16.mxu0 0
    %463 = vmatpush1.bf16.msra.mxu0 %v455
    %464 = vmatprep.subr.bf16.mxu0 0
    %465 = vmatpush1.bf16.msra.mxu0 %v456
    %466 = vmatprep.subr.bf16.mxu0 0
    %467 = vmatpush1.bf16.msra.mxu0 0
    %468 = vmatprep.subr.bf16.mxu0 0
    %469 = vmatpush1.bf16.msra.mxu0 0
    %470 = vmatprep.subr.bf16.mxu0 0
    %471 = vmatpush1.bf16.msra.mxu0 0
    %472 = vmatprep.subr.bf16.mxu0 0
    %473 = vmatpush1.bf16.msra.mxu0 0
    %474 = vmatprep.subr.bf16.mxu0 0
    %475 = vmatpush1.bf16.msra.mxu0 0
    %476 = vmatprep.subr.bf16.mxu0 0
    %477 = vmatpush1.bf16.msra.mxu0 0
    %478 = vmatprep.subr.bf16.mxu0 0
    %479 = vmatpush1.bf16.msra.mxu0 0
    %480 = vmatprep.subr.bf16.mxu0 0
    %481 = vmatpush1.bf16.msra.mxu0 0
    %482 = vmatprep.subr.bf16.mxu0 0
    %483 = vmatpush1.bf16.msra.mxu0 0
    %484 = vmatprep.subr.bf16.mxu0 0
    %485 = vmatpush1.bf16.msra.mxu0 0
    %486 = vmatprep.subr.bf16.mxu0 0
    %487 = vmatpush1.bf16.msra.mxu0 0
    %488 = vmatprep.subr.bf16.mxu0 0
    %489 = vmatpush1.bf16.msra.mxu0 0
    %490 = vmatprep.subr.bf16.mxu0 0
    %491 = vmatpush1.bf16.msra.mxu0 0
    %492 = vmatprep.subr.bf16.mxu0 0
    %493 = vmatpush1.bf16.msra.mxu0 0
    %494 = vmatprep.mubr.bf16.mxu0 0
    %495 = vmatmul.mubr.bf16.gmra.mrb[0].mxu0 %v460
    %v496 = vpop.f32.mrb[0].mxu0
    %v497 = vadd.f32 0.0, %v496
    %v498 = vpop.f32.mrb[0].mxu0
    %v499 = vpop.f32.mrb[0].mxu0
    %v500 = vpop.f32.mrb[0].mxu0
    %501 = vdwg.mxu0
    %v502 = vlaneseq
    %v503 = vshrl.u32 %v502, 7
    %v504 = vsub.s32 0, %v503
    %v505 = vrot.slane %v497, %v504
    %v506 = vadd.f32 %v358, %v505
    %v507 = vadd.f32 %v361, %v505
    %v509 = vlaneseq
    %v510 = vshrl.u32 %v509, 7
    %v511 = vsub.s32 0, %v510
    %v512 = vrot.slane %v214, %v511
    %v514 = vadd.f32 %v506, %v512
    %v515 = vadd.f32 %v507, %v512
    %516 = vst.msk [vmem:[#allocation2] sm:$0xff] %vm319, %v514
    %517 = vst.msk [vmem:[#allocation2 + $0x8] sm:$0xff] %vm319, %v515
    %v518 = vpack.c.bf16 %v515, %v514
    %v520 = vlaneseq
    %v521 = vshrl.u32 %v520, 7
    %v522 = vsub.s32 0, %v521
    %v523 = vrot.slane %v184, %v522
    %v529 = vunpack.c.l.b16 %v185
    %v530 = vunpack.c.l.b16 %v186
    %v531 = vunpack.c.l.b16 %v187
    %v532 = vunpack.c.l.b16 %v188
    %v533 = vpack.c.b16 %v530, %v529
    %v534 = vpack.c.b16 %v532, %v531
    %v538 = vsel %vm319, %v518, 0
    %540 = vmatprep.subr.bf16.mxu0 0
    %541 = vmatpush1.bf16.msra.mxu0 %v533
    %542 = vmatprep.subr.bf16.mxu0 0
    %543 = vmatpush1.bf16.msra.mxu0 %v534
    %544 = vmatprep.subr.bf16.mxu0 0
    %545 = vmatpush1.bf16.msra.mxu0 0
    %546 = vmatprep.subr.bf16.mxu0 0
    %547 = vmatpush1.bf16.msra.mxu0 0
    %548 = vmatprep.subr.bf16.mxu0 0
    %549 = vmatpush1.bf16.msra.mxu0 0
    %550 = vmatprep.subr.bf16.mxu0 0
    %551 = vmatpush1.bf16.msra.mxu0 0
    %552 = vmatprep.subr.bf16.mxu0 0
    %553 = vmatpush1.bf16.msra.mxu0 0
    %554 = vmatprep.subr.bf16.mxu0 0
    %555 = vmatpush1.bf16.msra.mxu0 0
    %556 = vmatprep.subr.bf16.mxu0 0
    %557 = vmatpush1.bf16.msra.mxu0 0
    %558 = vmatprep.subr.bf16.mxu0 0
    %559 = vmatpush1.bf16.msra.mxu0 0
    %560 = vmatprep.subr.bf16.mxu0 0
    %561 = vmatpush1.bf16.msra.mxu0 0
    %562 = vmatprep.subr.bf16.mxu0 0
    %563 = vmatpush1.bf16.msra.mxu0 0
    %564 = vmatprep.subr.bf16.mxu0 0
    %565 = vmatpush1.bf16.msra.mxu0 0
    %566 = vmatprep.subr.bf16.mxu0 0
    %567 = vmatpush1.bf16.msra.mxu0 0
    %568 = vmatprep.subr.bf16.mxu0 0
    %569 = vmatpush1.bf16.msra.mxu0 0
    %570 = vmatprep.subr.bf16.mxu0 0
    %571 = vmatpush1.bf16.msra.mxu0 0
    %572 = vmatprep.mubr.bf16.mxu0 0
    %573 = vmatmul.mubr.bf16.gmra.mrb[0].mxu0 %v538
    %v574 = vpop.f32.mrb[0].mxu0
    %v575 = vadd.f32 %v523, %v574
    %v576 = vpop.f32.mrb[0].mxu0
    %v577 = vpop.f32.mrb[0].mxu0
    %v578 = vadd.f32 %v523, %v577
    %v579 = vpop.f32.mrb[0].mxu0
    %580 = vdwg.mxu0
    %v581 = vmax.f32 %v575, 0.0
    %v582 = vmax.f32 %v578, 0.0
    %v583 = vpack.c.bf16 %v582, %v581
    %v585 = vlaneseq
    %v586 = vshrl.u32 %v585, 7
    %v587 = vsub.s32 0, %v586
    %v588 = vrot.slane %v182, %v587
    %v594 = vunpack.c.l.b16 %v192
    %v595 = vunpack.c.l.b16 %v193
    %v596 = vunpack.c.l.b16 %v194
    %v597 = vunpack.c.l.b16 %v195
    %v598 = vpack.c.b16 %v595, %v594
    %v599 = vpack.c.b16 %v597, %v596
    %v603 = vsel %vm319, %v583, 0
    %605 = vmatprep.subr.bf16.mxu0 0
    %606 = vmatpush1.bf16.msra.mxu0 %v598
    %607 = vmatprep.subr.bf16.mxu0 0
    %608 = vmatpush1.bf16.msra.mxu0 %v599
    %609 = vmatprep.subr.bf16.mxu0 0
    %610 = vmatpush1.bf16.msra.mxu0 0
    %611 = vmatprep.subr.bf16.mxu0 0
    %612 = vmatpush1.bf16.msra.mxu0 0
    %613 = vmatprep.subr.bf16.mxu0 0
    %614 = vmatpush1.bf16.msra.mxu0 0
    %615 = vmatprep.subr.bf16.mxu0 0
    %616 = vmatpush1.bf16.msra.mxu0 0
    %617 = vmatprep.subr.bf16.mxu0 0
    %618 = vmatpush1.bf16.msra.mxu0 0
    %619 = vmatprep.subr.bf16.mxu0 0
    %620 = vmatpush1.bf16.msra.mxu0 0
    %621 = vmatprep.subr.bf16.mxu0 0
    %622 = vmatpush1.bf16.msra.mxu0 0
    %623 = vmatprep.subr.bf16.mxu0 0
    %624 = vmatpush1.bf16.msra.mxu0 0
    %625 = vmatprep.subr.bf16.mxu0 0
    %626 = vmatpush1.bf16.msra.mxu0 0
    %627 = vmatprep.subr.bf16.mxu0 0
    %628 = vmatpush1.bf16.msra.mxu0 0
    %629 = vmatprep.subr.bf16.mxu0 0
    %630 = vmatpush1.bf16.msra.mxu0 0
    %631 = vmatprep.subr.bf16.mxu0 0
    %632 = vmatpush1.bf16.msra.mxu0 0
    %633 = vmatprep.subr.bf16.mxu0 0
    %634 = vmatpush1.bf16.msra.mxu0 0
    %635 = vmatprep.subr.bf16.mxu0 0
    %636 = vmatpush1.bf16.msra.mxu0 0
    %637 = vmatprep.mubr.bf16.mxu0 0
    %638 = vmatmul.mubr.bf16.gmra.mrb[0].mxu0 %v603
    %v639 = vpop.f32.mrb[0].mxu0
    %v640 = vadd.f32 %v588, %v639
    %v641 = vpop.f32.mrb[0].mxu0
    %v642 = vpop.f32.mrb[0].mxu0
    %v643 = vadd.f32 %v588, %v642
    %v644 = vpop.f32.mrb[0].mxu0
    %645 = vdwg.mxu0
    %v646 = vsel %vm319, %v640, 0.0
    %647 = vadd.xlane.f32.xlu0 %v646
    %v648 = vpop.xlane.xlu0 %647
    %v649 = vsel %vm319, %v643, 0.0
    %650 = vadd.xlane.f32.xlu0 %v649
    %v651 = vpop.xlane.xlu0 %650
    %v652 = vmul.f32 %v648, %v433
    %v653 = vmul.f32 %v651, %v433
    %v654 = vsub.f32 %v640, %v652
    %v655 = vsub.f32 %v643, %v653
    %v656 = vmul.f32 %v654, %v654
    %v657 = vmul.f32 %v655, %v655
    %v658 = vsel %vm319, %v656, 0.0
    %659 = vadd.xlane.f32.xlu0 %v658
    %v660 = vpop.xlane.xlu0 %659
    %v661 = vsel %vm319, %v657, 0.0
    %662 = vadd.xlane.f32.xlu0 %v661
    %v663 = vpop.xlane.xlu0 %662
    %v664 = vmul.f32 %v660, %v433
    %v665 = vmul.f32 %v663, %v433
    %v666 = vadd.f32 %v664, 1e-05
    %v667 = vadd.f32 %v665, 1e-05
    %v668 = vrsqrt.pop %v666
    %v669 = vrsqrt.pop %v667
    %v670 = vmul.f32 %v654, %v668
    %v671 = vmul.f32 %v655, %v669
    %v673 = vlaneseq
    %v674 = vshrl.u32 %v673, 7
    %v675 = vsub.s32 0, %v674
    %v676 = vrot.slane %v183, %v675
    %v678 = vmul.f32 %v670, %v676
    %v679 = vmul.f32 %v671, %v676
    %v681 = vlaneseq
    %v682 = vshrl.u32 %v681, 7
    %v683 = vsub.s32 0, %v682
    %v684 = vrot.slane %v180, %v683
    %v686 = vadd.f32 %v678, %v684
    %v687 = vadd.f32 %v679, %v684
    %690 = vrot.lane.b32.xlu0 %v640, 96
    %v691 = vpop.permute.xlu0 %690
    %692 = vrot.lane.b32.xlu0 %v643, 96
    %v693 = vpop.permute.xlu0 %692
    %v696 = vsel %vm319, %v691, 0.0
    %697 = vadd.xlane.f32.xlu0 %v696
    %v698 = vpop.xlane.xlu0 %697
    %v699 = vsel %vm319, %v693, 0.0
    %700 = vadd.xlane.f32.xlu0 %v699
    %v701 = vpop.xlane.xlu0 %700
    %v702 = vmul.f32 %v698, %v433
    %v703 = vmul.f32 %v701, %v433
    %v704 = vsub.f32 %v640, %v702
    %v705 = vsub.f32 %v643, %v703
    %v706 = vmul.f32 %v704, %v704
    %v707 = vmul.f32 %v705, %v705
    %710 = vrot.lane.b32.xlu0 %v706, 96
    %v711 = vpop.permute.xlu0 %710
    %712 = vrot.lane.b32.xlu0 %v707, 96
    %v713 = vpop.permute.xlu0 %712
    %v716 = vsel %vm319, %v711, 0.0
    %717 = vadd.xlane.f32.xlu0 %v716
    %v718 = vpop.xlane.xlu0 %717
    %v719 = vsel %vm319, %v713, 0.0
    %720 = vadd.xlane.f32.xlu0 %v719
    %v721 = vpop.xlane.xlu0 %720
    %v722 = vmul.f32 %v718, %v433
    %v723 = vmul.f32 %v721, %v433
    %v724 = vadd.f32 %v722, 1e-05
    %v725 = vadd.f32 %v723, 1e-05
    %v726 = vrsqrt.pop %v724
    %v727 = vrsqrt.pop %v725
    %v728 = vmul.f32 %v704, %v726
    %v729 = vmul.f32 %v705, %v727
    %v730 = vmul.f32 %v728, %v676
    %v731 = vmul.f32 %v729, %v676
    %v732 = vadd.f32 %v730, %v684
    %v733 = vadd.f32 %v731, %v684
    %734 = vrot.lane.b32.xlu0 %v640, 64
    %v735 = vpop.permute.xlu0 %734
    %736 = vrot.lane.b32.xlu0 %v643, 64
    %v737 = vpop.permute.xlu0 %736
    %v740 = vsel %vm319, %v735, 0.0
    %741 = vadd.xlane.f32.xlu0 %v740
    %v742 = vpop.xlane.xlu0 %741
    %v743 = vsel %vm319, %v737, 0.0
    %744 = vadd.xlane.f32.xlu0 %v743
    %v745 = vpop.xlane.xlu0 %744
    %v746 = vmul.f32 %v742, %v433
    %v747 = vmul.f32 %v745, %v433
    %v748 = vsub.f32 %v640, %v746
    %v749 = vsub.f32 %v643, %v747
    %v750 = vmul.f32 %v748, %v748
    %v751 = vmul.f32 %v749, %v749
    %754 = vrot.lane.b32.xlu0 %v750, 64
    %v755 = vpop.permute.xlu0 %754
    %756 = vrot.lane.b32.xlu0 %v751, 64
    %v757 = vpop.permute.xlu0 %756
    %v760 = vsel %vm319, %v755, 0.0
    %761 = vadd.xlane.f32.xlu0 %v760
    %v762 = vpop.xlane.xlu0 %761
    %v763 = vsel %vm319, %v757, 0.0
    %764 = vadd.xlane.f32.xlu0 %v763
    %v765 = vpop.xlane.xlu0 %764
    %v766 = vmul.f32 %v762, %v433
    %v767 = vmul.f32 %v765, %v433
    %v768 = vadd.f32 %v766, 1e-05
    %v769 = vadd.f32 %v767, 1e-05
    %v770 = vrsqrt.pop %v768
    %v771 = vrsqrt.pop %v769
    %v772 = vmul.f32 %v748, %v770
    %v773 = vmul.f32 %v749, %v771
    %v774 = vmul.f32 %v772, %v676
    %v775 = vmul.f32 %v773, %v676
    %v776 = vadd.f32 %v774, %v684
    %v777 = vadd.f32 %v775, %v684
    %v779 = vlaneseq
    %v780 = vshrl.u32 %v779, 7
    %v781 = vsub.s32 0, %v780
    %v782 = vrot.slane %v181, %v781
    %v786 = vunpack.c.l.b16 %v238
    %v787 = vunpack.c.l.b16 %v239
    %v788 = vpack.c.b16 %v787, %v786
    %v790 = vsel %vm249, %v788, 0
    %v793 = vsel %vm253, %v191, 0
    %795 = vmatprep.subr.bf16.mxu0 0
    %796 = vmatpush1.bf16.msra.mxu0 %v793
    %797 = vmatprep.subr.bf16.mxu0 0
    %798 = vmatpush1.bf16.msra.mxu0 0
    %799 = vmatprep.subr.bf16.mxu0 0
    %800 = vmatpush1.bf16.msra.mxu0 0
    %801 = vmatprep.subr.bf16.mxu0 0
    %802 = vmatpush1.bf16.msra.mxu0 0
    %803 = vmatprep.subr.bf16.mxu0 0
    %804 = vmatpush1.bf16.msra.mxu0 0
    %805 = vmatprep.subr.bf16.mxu0 0
    %806 = vmatpush1.bf16.msra.mxu0 0
    %807 = vmatprep.subr.bf16.mxu0 0
    %808 = vmatpush1.bf16.msra.mxu0 0
    %809 = vmatprep.subr.bf16.mxu0 0
    %810 = vmatpush1.bf16.msra.mxu0 0
    %811 = vmatprep.subr.bf16.mxu0 0
    %812 = vmatpush1.bf16.msra.mxu0 0
    %813 = vmatprep.subr.bf16.mxu0 0
    %814 = vmatpush1.bf16.msra.mxu0 0
    %815 = vmatprep.subr.bf16.mxu0 0
    %816 = vmatpush1.bf16.msra.mxu0 0
    %817 = vmatprep.subr.bf16.mxu0 0
    %818 = vmatpush1.bf16.msra.mxu0 0
    %819 = vmatprep.subr.bf16.mxu0 0
    %820 = vmatpush1.bf16.msra.mxu0 0
    %821 = vmatprep.subr.bf16.mxu0 0
    %822 = vmatpush1.bf16.msra.mxu0 0
    %823 = vmatprep.subr.bf16.mxu0 0
    %824 = vmatpush1.bf16.msra.mxu0 0
    %825 = vmatprep.subr.bf16.mxu0 0
    %826 = vmatpush1.bf16.msra.mxu0 0
    %827 = vmatprep.mubr.bf16.mxu0 0
    %828 = vmatmul.mubr.bf16.gmra.mrb[0].mxu0 %v790
    %v829 = vpop.f32.mrb[0].mxu0
    %v830 = vadd.f32 %v782, %v829
    %v831 = vpop.f32.mrb[0].mxu0
    %v832 = vpop.f32.mrb[0].mxu0
    %v833 = vadd.f32 %v782, %v832
    %v834 = vpop.f32.mrb[0].mxu0
    %835 = vdwg.mxu0
    %v836 = vmul.f32 %v830, %v830
    %v837 = vmul.f32 %v833, %v833
    %v838 = vsel %vm319, %v836, 0.0
    %839 = vadd.xlane.f32.xlu0 %v838
    %v840 = vpop.xlane.xlu0 %839
    %v841 = vsel %vm319, %v837, 0.0
    %842 = vadd.xlane.f32.xlu0 %v841
    %v843 = vpop.xlane.xlu0 %842
    %v844 = vmax.f32 %v840, 1e-24
    %v845 = vmax.f32 %v843, 1e-24
    %v846 = vrsqrt.pop %v844
    %v847 = vrsqrt.pop %v845
    %v848 = vmul.f32 %v830, %v846
    %v849 = vmul.f32 %v833, %v847
    %v850 = vpack.c.bf16 %v687, %v686
    %v851 = vpack.c.bf16 %v733, %v732
    %853 = vrot.lane.b32.xlu0 %v851, 96
    %v854 = vpop.permute.xlu0 %853
    %v856 = vsel %vm319, %v850, 0
    %v859 = vsel %vm319, %v854, 0
    %861 = vmatprep.subr.bf16.mxu0 0
    %862 = vmatpush1.bf16.xpose.msra.mxu0 %v859
    %863 = vmatprep.subr.bf16.mxu0 0
    %864 = vmatpush1.bf16.xpose.msra.mxu0 0
    %865 = vmatprep.subr.bf16.mxu0 0
    %866 = vmatpush1.bf16.xpose.msra.mxu0 0
    %867 = vmatprep.subr.bf16.mxu0 0
    %868 = vmatpush1.bf16.xpose.msra.mxu0 0
    %869 = vmatprep.subr.bf16.mxu0 0
    %870 = vmatpush1.bf16.xpose.msra.mxu0 0
    %871 = vmatprep.subr.bf16.mxu0 0
    %872 = vmatpush1.bf16.xpose.msra.mxu0 0
    %873 = vmatprep.subr.bf16.mxu0 0
    %874 = vmatpush1.bf16.xpose.msra.mxu0 0
    %875 = vmatprep.subr.bf16.mxu0 0
    %876 = vmatpush1.bf16.xpose.msra.mxu0 0
    %877 = vmatprep.subr.bf16.mxu0 0
    %878 = vmatpush1.bf16.xpose.msra.mxu0 0
    %879 = vmatprep.subr.bf16.mxu0 0
    %880 = vmatpush1.bf16.xpose.msra.mxu0 0
    %881 = vmatprep.subr.bf16.mxu0 0
    %882 = vmatpush1.bf16.xpose.msra.mxu0 0
    %883 = vmatprep.subr.bf16.mxu0 0
    %884 = vmatpush1.bf16.xpose.msra.mxu0 0
    %885 = vmatprep.subr.bf16.mxu0 0
    %886 = vmatpush1.bf16.xpose.msra.mxu0 0
    %887 = vmatprep.subr.bf16.mxu0 0
    %888 = vmatpush1.bf16.xpose.msra.mxu0 0
    %889 = vmatprep.subr.bf16.mxu0 0
    %890 = vmatpush1.bf16.xpose.msra.mxu0 0
    %891 = vmatprep.subr.bf16.mxu0 0
    %892 = vmatpush1.bf16.xpose.msra.mxu0 0
    %893 = vmatprep.mubr.bf16.mxu0 0
    %894 = vmatmul.mubr.bf16.gmra.mrb[0].mxu0 %v856
    %v895 = vpop.f32.mrb[0].mxu0
    %v896 = vadd.f32 0.0, %v895
    %v897 = vpop.f32.mrb[0].mxu0
    %v898 = vpop.f32.mrb[0].mxu0
    %v899 = vadd.f32 0.0, %v898
    %v900 = vpop.f32.mrb[0].mxu0
    %901 = vdwg.mxu0
    %v902 = vmul.f32 %v896, 0.17677669
    %v903 = vmul.f32 %v899, 0.17677669
    %v904 = vpack.c.bf16 %v849, %v848
    %v906 = vsel %vm319, %v904, 0
    %908 = vmatprep.subr.bf16.mxu0 0
    %909 = vmatpush1.bf16.xpose.msra.mxu0 %v906
    %910 = vmatprep.subr.bf16.mxu0 0
    %911 = vmatpush1.bf16.xpose.msra.mxu0 0
    %912 = vmatprep.subr.bf16.mxu0 0
    %913 = vmatpush1.bf16.xpose.msra.mxu0 0
    %914 = vmatprep.subr.bf16.mxu0 0
    %915 = vmatpush1.bf16.xpose.msra.mxu0 0
    %916 = vmatprep.subr.bf16.mxu0 0
    %917 = vmatpush1.bf16.xpose.msra.mxu0 0
    %918 = vmatprep.subr.bf16.mxu0 0
    %919 = vmatpush1.bf16.xpose.msra.mxu0 0
    %920 = vmatprep.subr.bf16.mxu0 0
    %921 = vmatpush1.bf16.xpose.msra.mxu0 0
    %922 = vmatprep.subr.bf16.mxu0 0
    %923 = vmatpush1.bf16.xpose.msra.mxu0 0
    %924 = vmatprep.subr.bf16.mxu0 0
    %925 = vmatpush1.bf16.xpose.msra.mxu0 0
    %926 = vmatprep.subr.bf16.mxu0 0
    %927 = vmatpush1.bf16.xpose.msra.mxu0 0
    %928 = vmatprep.subr.bf16.mxu0 0
    %929 = vmatpush1.bf16.xpose.msra.mxu0 0
    %930 = vmatprep.subr.bf16.mxu0 0
    %931 = vmatpush1.bf16.xpose.msra.mxu0 0
    %932 = vmatprep.subr.bf16.mxu0 0
    %933 = vmatpush1.bf16.xpose.msra.mxu0 0
    %934 = vmatprep.subr.bf16.mxu0 0
    %935 = vmatpush1.bf16.xpose.msra.mxu0 0
    %936 = vmatprep.subr.bf16.mxu0 0
    %937 = vmatpush1.bf16.xpose.msra.mxu0 0
    %938 = vmatprep.subr.bf16.mxu0 0
    %939 = vmatpush1.bf16.xpose.msra.mxu0 0
    %940 = vmatprep.mubr.bf16.mxu0 0
    %941 = vmatmul.mubr.bf16.gmra.mrb[0].mxu0 %v906
    %v942 = vpop.f32.mrb[0].mxu0
    %v943 = vadd.f32 0.0, %v942
    %v944 = vpop.f32.mrb[0].mxu0
    %v945 = vpop.f32.mrb[0].mxu0
    %v946 = vadd.f32 0.0, %v945
    %v947 = vpop.f32.mrb[0].mxu0
    %948 = vdwg.mxu0
    %v949 = vadd.f32 %v902, %v943
    %v950 = vadd.f32 %v903, %v946
    %v951 = vmul.f32 %v949, %v240
    %v952 = vmul.f32 %v950, %v241
    %v953 = vsub.f32 %v240, 1.0
    %v954 = vsub.f32 %v241, 1.0
    %v955 = vmul.f32 %v953, 10000.0
    %v956 = vmul.f32 %v954, 10000.0
    %v957 = vadd.f32 %v951, %v955
    %v958 = vadd.f32 %v952, %v956
    %vm959 = vcmask 130048
    %v960 = vsel %vm959, %v957, -inf
    %961 = vmax.xlane.f32.xlu0 %v960
    %v962 = vpop.xlane.xlu0 %961
    %v963 = vsel %vm959, %v958, -inf
    %964 = vmax.xlane.f32.xlu0 %v963
    %v965 = vpop.xlane.xlu0 %964
    %v966 = vsub.f32 %v957, %v962
    %v967 = vsub.f32 %v958, %v965
    %v968 = vmul.f32 %v966, 1.442695
    %v969 = vpow.pop %v968
    %v970 = vmul.f32 %v967, 1.442695
    %v971 = vpow.pop %v970
    %v972 = vsel %vm959, %v969, 0.0
    %973 = vadd.xlane.f32.xlu0 %v972
    %v974 = vpop.xlane.xlu0 %973
    %v975 = vsel %vm959, %v971, 0.0
    %976 = vadd.xlane.f32.xlu0 %v975
    %v977 = vpop.xlane.xlu0 %976
    %v978 = vrcp.pop %v974
    %v979 = vrcp.pop %v977
    %v980 = vmul.f32 %v969, %v978
    %v981 = vmul.f32 %v971, %v979
    %v982 = vpack.c.bf16 %v981, %v980
    %v983 = vpack.c.bf16 %v777, %v776
    %985 = vrot.lane.b32.xlu0 %v983, 64
    %v986 = vpop.permute.xlu0 %985
    %v989 = vsel %vm959, %v982, 0
    %991 = vmatprep.subr.bf16.mxu0 0
    %992 = vmatpush1.bf16.msra.mxu0 %v986
    %993 = vmatprep.subr.bf16.mxu0 0
    %994 = vmatpush1.bf16.msra.mxu0 0
    %995 = vmatprep.subr.bf16.mxu0 0
    %996 = vmatpush1.bf16.msra.mxu0 0
    %997 = vmatprep.subr.bf16.mxu0 0
    %998 = vmatpush1.bf16.msra.mxu0 0
    %999 = vmatprep.subr.bf16.mxu0 0
    %1000 = vmatpush1.bf16.msra.mxu0 0
    %1001 = vmatprep.subr.bf16.mxu0 0
    %1002 = vmatpush1.bf16.msra.mxu0 0
    %1003 = vmatprep.subr.bf16.mxu0 0
    %1004 = vmatpush1.bf16.msra.mxu0 0
    %1005 = vmatprep.subr.bf16.mxu0 0
    %1006 = vmatpush1.bf16.msra.mxu0 0
    %1007 = vmatprep.subr.bf16.mxu0 0
    %1008 = vmatpush1.bf16.msra.mxu0 0
    %1009 = vmatprep.subr.bf16.mxu0 0
    %1010 = vmatpush1.bf16.msra.mxu0 0
    %1011 = vmatprep.subr.bf16.mxu0 0
    %1012 = vmatpush1.bf16.msra.mxu0 0
    %1013 = vmatprep.subr.bf16.mxu0 0
    %1014 = vmatpush1.bf16.msra.mxu0 0
    %1015 = vmatprep.subr.bf16.mxu0 0
    %1016 = vmatpush1.bf16.msra.mxu0 0
    %1017 = vmatprep.subr.bf16.mxu0 0
    %1018 = vmatpush1.bf16.msra.mxu0 0
    %1019 = vmatprep.subr.bf16.mxu0 0
    %1020 = vmatpush1.bf16.msra.mxu0 0
    %1021 = vmatprep.subr.bf16.mxu0 0
    %1022 = vmatpush1.bf16.msra.mxu0 0
    %1023 = vmatprep.mubr.bf16.mxu0 0
    %1024 = vmatmul.mubr.bf16.gmra.mrb[0].mxu0 %v989
    %v1025 = vpop.f32.mrb[0].mxu0
    %v1026 = vadd.f32 %v514, %v1025
    %v1027 = vpop.f32.mrb[0].mxu0
    %v1028 = vpop.f32.mrb[0].mxu0
    %v1029 = vadd.f32 %v515, %v1028
    %v1030 = vpop.f32.mrb[0].mxu0
    %1031 = vdwg.mxu0
    %v1032 = vsel %vm319, %v1026, 0.0
    %1033 = vadd.xlane.f32.xlu0 %v1032
    %v1034 = vpop.xlane.xlu0 %1033
    %v1035 = vsel %vm319, %v1029, 0.0
    %1036 = vadd.xlane.f32.xlu0 %v1035
    %v1037 = vpop.xlane.xlu0 %1036
    %v1038 = vmul.f32 %v1034, %v433
    %v1039 = vmul.f32 %v1037, %v433
    %v1040 = vsub.f32 %v1026, %v1038
    %v1041 = vsub.f32 %v1029, %v1039
    %v1042 = vmul.f32 %v1040, %v1040
    %v1043 = vmul.f32 %v1041, %v1041
    %v1044 = vsel %vm319, %v1042, 0.0
    %1045 = vadd.xlane.f32.xlu0 %v1044
    %v1046 = vpop.xlane.xlu0 %1045
    %v1047 = vsel %vm319, %v1043, 0.0
    %1048 = vadd.xlane.f32.xlu0 %v1047
    %v1049 = vpop.xlane.xlu0 %1048
    %v1050 = vmul.f32 %v1046, %v433
    %v1051 = vmul.f32 %v1049, %v433
    %v1052 = vadd.f32 %v1050, 1e-05
    %v1053 = vadd.f32 %v1051, 1e-05
    %v1054 = vrsqrt.pop %v1052
    %v1055 = vrsqrt.pop %v1053
    %v1056 = vmul.f32 %v1040, %v1054
    %v1057 = vmul.f32 %v1041, %v1055
    %v1059 = vlaneseq
    %v1060 = vshrl.u32 %v1059, 7
    %v1061 = vsub.s32 0, %v1060
    %v1062 = vrot.slane %v190, %v1061
    %v1064 = vmul.f32 %v1056, %v1062
    %v1065 = vmul.f32 %v1057, %v1062
    %v1067 = vlaneseq
    %v1068 = vshrl.u32 %v1067, 7
    %v1069 = vsub.s32 0, %v1068
    %v1070 = vrot.slane %v189, %v1069
    %v1072 = vadd.f32 %v1064, %v1070
    %v1073 = vadd.f32 %v1065, %v1070
    %1074 = vst.msk [vmem:[#allocation6] sm:$0xff] %vm959, %v980
    %1075 = vst.msk [vmem:[#allocation6 + $0x8] sm:$0xff] %vm959, %v981
    %v1076 = vpack.c.bf16 %v1073, %v1072
    %v1078 = vlaneseq
    %v1079 = vshrl.u32 %v1078, 7
    %v1080 = vsub.s32 0, %v1079
    %v1081 = vrot.slane %v200, %v1080
    %v1087 = vunpack.c.l.b16 %v201
    %v1088 = vunpack.c.l.b16 %v202
    %v1089 = vunpack.c.l.b16 %v203
    %v1090 = vunpack.c.l.b16 %v204
    %v1091 = vpack.c.b16 %v1088, %v1087
    %v1092 = vpack.c.b16 %v1090, %v1089
    %v1096 = vsel %vm319, %v1076, 0
    %1098 = vmatprep.subr.bf16.mxu0 0
    %1099 = vmatpush1.bf16.msra.mxu0 %v1091
    %1100 = vmatprep.subr.bf16.mxu0 0
    %1101 = vmatpush1.bf16.msra.mxu0 %v1092
    %1102 = vmatprep.subr.bf16.mxu0 0
    %1103 = vmatpush1.bf16.msra.mxu0 0
    %1104 = vmatprep.subr.bf16.mxu0 0
    %1105 = vmatpush1.bf16.msra.mxu0 0
    %1106 = vmatprep.subr.bf16.mxu0 0
    %1107 = vmatpush1.bf16.msra.mxu0 0
    %1108 = vmatprep.subr.bf16.mxu0 0
    %1109 = vmatpush1.bf16.msra.mxu0 0
    %1110 = vmatprep.subr.bf16.mxu0 0
    %1111 = vmatpush1.bf16.msra.mxu0 0
    %1112 = vmatprep.subr.bf16.mxu0 0
    %1113 = vmatpush1.bf16.msra.mxu0 0
    %1114 = vmatprep.subr.bf16.mxu0 0
    %1115 = vmatpush1.bf16.msra.mxu0 0
    %1116 = vmatprep.subr.bf16.mxu0 0
    %1117 = vmatpush1.bf16.msra.mxu0 0
    %1118 = vmatprep.subr.bf16.mxu0 0
    %1119 = vmatpush1.bf16.msra.mxu0 0
    %1120 = vmatprep.subr.bf16.mxu0 0
    %1121 = vmatpush1.bf16.msra.mxu0 0
    %1122 = vmatprep.subr.bf16.mxu0 0
    %1123 = vmatpush1.bf16.msra.mxu0 0
    %1124 = vmatprep.subr.bf16.mxu0 0
    %1125 = vmatpush1.bf16.msra.mxu0 0
    %1126 = vmatprep.subr.bf16.mxu0 0
    %1127 = vmatpush1.bf16.msra.mxu0 0
    %1128 = vmatprep.subr.bf16.mxu0 0
    %1129 = vmatpush1.bf16.msra.mxu0 0
    %1130 = vmatprep.mubr.bf16.mxu0 0
    %1131 = vmatmul.mubr.bf16.gmra.mrb[0].mxu0 %v1096
    %v1132 = vpop.f32.mrb[0].mxu0
    %v1133 = vadd.f32 %v1081, %v1132
    %v1134 = vpop.f32.mrb[0].mxu0
    %v1135 = vpop.f32.mrb[0].mxu0
    %v1136 = vadd.f32 %v1081, %v1135
    %v1137 = vpop.f32.mrb[0].mxu0
    %1138 = vdwg.mxu0
    %v1139 = vmax.f32 %v1133, 0.0
    %v1140 = vmax.f32 %v1136, 0.0
    %v1141 = vpack.c.bf16 %v1140, %v1139
    %v1143 = vlaneseq
    %v1144 = vshrl.u32 %v1143, 7
    %v1145 = vsub.s32 0, %v1144
    %v1146 = vrot.slane %v198, %v1145
    %v1152 = vunpack.c.l.b16 %v208
    %v1153 = vunpack.c.l.b16 %v209
    %v1154 = vunpack.c.l.b16 %v210
    %v1155 = vunpack.c.l.b16 %v211
    %v1156 = vpack.c.b16 %v1153, %v1152
    %v1157 = vpack.c.b16 %v1155, %v1154
    %v1161 = vsel %vm319, %v1141, 0
    %1163 = vmatprep.subr.bf16.mxu0 0
    %1164 = vmatpush1.bf16.msra.mxu0 %v1156
    %1165 = vmatprep.subr.bf16.mxu0 0
    %1166 = vmatpush1.bf16.msra.mxu0 %v1157
    %1167 = vmatprep.subr.bf16.mxu0 0
    %1168 = vmatpush1.bf16.msra.mxu0 0
    %1169 = vmatprep.subr.bf16.mxu0 0
    %1170 = vmatpush1.bf16.msra.mxu0 0
    %1171 = vmatprep.subr.bf16.mxu0 0
    %1172 = vmatpush1.bf16.msra.mxu0 0
    %1173 = vmatprep.subr.bf16.mxu0 0
    %1174 = vmatpush1.bf16.msra.mxu0 0
    %1175 = vmatprep.subr.bf16.mxu0 0
    %1176 = vmatpush1.bf16.msra.mxu0 0
    %1177 = vmatprep.subr.bf16.mxu0 0
    %1178 = vmatpush1.bf16.msra.mxu0 0
    %1179 = vmatprep.subr.bf16.mxu0 0
    %1180 = vmatpush1.bf16.msra.mxu0 0
    %1181 = vmatprep.subr.bf16.mxu0 0
    %1182 = vmatpush1.bf16.msra.mxu0 0
    %1183 = vmatprep.subr.bf16.mxu0 0
    %1184 = vmatpush1.bf16.msra.mxu0 0
    %1185 = vmatprep.subr.bf16.mxu0 0
    %1186 = vmatpush1.bf16.msra.mxu0 0
    %1187 = vmatprep.subr.bf16.mxu0 0
    %1188 = vmatpush1.bf16.msra.mxu0 0
    %1189 = vmatprep.subr.bf16.mxu0 0
    %1190 = vmatpush1.bf16.msra.mxu0 0
    %1191 = vmatprep.subr.bf16.mxu0 0
    %1192 = vmatpush1.bf16.msra.mxu0 0
    %1193 = vmatprep.subr.bf16.mxu0 0
    %1194 = vmatpush1.bf16.msra.mxu0 0
    %1195 = vmatprep.mubr.bf16.mxu0 0
    %1196 = vmatmul.mubr.bf16.gmra.mrb[0].mxu0 %v1161
    %v1197 = vpop.f32.mrb[0].mxu0
    %v1198 = vadd.f32 %v1146, %v1197
    %v1199 = vpop.f32.mrb[0].mxu0
    %v1200 = vpop.f32.mrb[0].mxu0
    %v1201 = vadd.f32 %v1146, %v1200
    %v1202 = vpop.f32.mrb[0].mxu0
    %1203 = vdwg.mxu0
    %v1204 = vsel %vm319, %v1198, 0.0
    %1205 = vadd.xlane.f32.xlu0 %v1204
    %v1206 = vpop.xlane.xlu0 %1205
    %v1207 = vsel %vm319, %v1201, 0.0
    %1208 = vadd.xlane.f32.xlu0 %v1207
    %v1209 = vpop.xlane.xlu0 %1208
    %v1210 = vmul.f32 %v1206, %v433
    %v1211 = vmul.f32 %v1209, %v433
    %v1212 = vsub.f32 %v1198, %v1210
    %v1213 = vsub.f32 %v1201, %v1211
    %v1214 = vmul.f32 %v1212, %v1212
    %v1215 = vmul.f32 %v1213, %v1213
    %v1216 = vsel %vm319, %v1214, 0.0
    %1217 = vadd.xlane.f32.xlu0 %v1216
    %v1218 = vpop.xlane.xlu0 %1217
    %v1219 = vsel %vm319, %v1215, 0.0
    %1220 = vadd.xlane.f32.xlu0 %v1219
    %v1221 = vpop.xlane.xlu0 %1220
    %v1222 = vmul.f32 %v1218, %v433
    %v1223 = vmul.f32 %v1221, %v433
    %v1224 = vadd.f32 %v1222, 1e-05
    %v1225 = vadd.f32 %v1223, 1e-05
    %v1226 = vrsqrt.pop %v1224
    %v1227 = vrsqrt.pop %v1225
    %v1228 = vmul.f32 %v1212, %v1226
    %v1229 = vmul.f32 %v1213, %v1227
    %v1231 = vlaneseq
    %v1232 = vshrl.u32 %v1231, 7
    %v1233 = vsub.s32 0, %v1232
    %v1234 = vrot.slane %v199, %v1233
    %v1236 = vmul.f32 %v1228, %v1234
    %v1237 = vmul.f32 %v1229, %v1234
    %v1239 = vlaneseq
    %v1240 = vshrl.u32 %v1239, 7
    %v1241 = vsub.s32 0, %v1240
    %v1242 = vrot.slane %v196, %v1241
    %v1244 = vadd.f32 %v1236, %v1242
    %v1245 = vadd.f32 %v1237, %v1242
    %1248 = vrot.lane.b32.xlu0 %v1198, 96
    %v1249 = vpop.permute.xlu0 %1248
    %1250 = vrot.lane.b32.xlu0 %v1201, 96
    %v1251 = vpop.permute.xlu0 %1250
    %v1254 = vsel %vm319, %v1249, 0.0
    %1255 = vadd.xlane.f32.xlu0 %v1254
    %v1256 = vpop.xlane.xlu0 %1255
    %v1257 = vsel %vm319, %v1251, 0.0
    %1258 = vadd.xlane.f32.xlu0 %v1257
    %v1259 = vpop.xlane.xlu0 %1258
    %v1260 = vmul.f32 %v1256, %v433
    %v1261 = vmul.f32 %v1259, %v433
    %v1262 = vsub.f32 %v1198, %v1260
    %v1263 = vsub.f32 %v1201, %v1261
    %v1264 = vmul.f32 %v1262, %v1262
    %v1265 = vmul.f32 %v1263, %v1263
    %1268 = vrot.lane.b32.xlu0 %v1264, 96
    %v1269 = vpop.permute.xlu0 %1268
    %1270 = vrot.lane.b32.xlu0 %v1265, 96
    %v1271 = vpop.permute.xlu0 %1270
    %v1274 = vsel %vm319, %v1269, 0.0
    %1275 = vadd.xlane.f32.xlu0 %v1274
    %v1276 = vpop.xlane.xlu0 %1275
    %v1277 = vsel %vm319, %v1271, 0.0
    %1278 = vadd.xlane.f32.xlu0 %v1277
    %v1279 = vpop.xlane.xlu0 %1278
    %v1280 = vmul.f32 %v1276, %v433
    %v1281 = vmul.f32 %v1279, %v433
    %v1282 = vadd.f32 %v1280, 1e-05
    %v1283 = vadd.f32 %v1281, 1e-05
    %v1284 = vrsqrt.pop %v1282
    %v1285 = vrsqrt.pop %v1283
    %v1286 = vmul.f32 %v1262, %v1284
    %v1287 = vmul.f32 %v1263, %v1285
    %v1288 = vmul.f32 %v1286, %v1234
    %v1289 = vmul.f32 %v1287, %v1234
    %v1290 = vadd.f32 %v1288, %v1242
    %v1291 = vadd.f32 %v1289, %v1242
    %1292 = vrot.lane.b32.xlu0 %v1198, 64
    %v1293 = vpop.permute.xlu0 %1292
    %1294 = vrot.lane.b32.xlu0 %v1201, 64
    %v1295 = vpop.permute.xlu0 %1294
    %v1298 = vsel %vm319, %v1293, 0.0
    %1299 = vadd.xlane.f32.xlu0 %v1298
    %v1300 = vpop.xlane.xlu0 %1299
    %v1301 = vsel %vm319, %v1295, 0.0
    %1302 = vadd.xlane.f32.xlu0 %v1301
    %v1303 = vpop.xlane.xlu0 %1302
    %v1304 = vmul.f32 %v1300, %v433
    %v1305 = vmul.f32 %v1303, %v433
    %v1306 = vsub.f32 %v1198, %v1304
    %v1307 = vsub.f32 %v1201, %v1305
    %v1308 = vmul.f32 %v1306, %v1306
    %v1309 = vmul.f32 %v1307, %v1307
    %1312 = vrot.lane.b32.xlu0 %v1308, 64
    %v1313 = vpop.permute.xlu0 %1312
    %1314 = vrot.lane.b32.xlu0 %v1309, 64
    %v1315 = vpop.permute.xlu0 %1314
    %v1318 = vsel %vm319, %v1313, 0.0
    %1319 = vadd.xlane.f32.xlu0 %v1318
    %v1320 = vpop.xlane.xlu0 %1319
    %v1321 = vsel %vm319, %v1315, 0.0
    %1322 = vadd.xlane.f32.xlu0 %v1321
    %v1323 = vpop.xlane.xlu0 %1322
    %v1324 = vmul.f32 %v1320, %v433
    %v1325 = vmul.f32 %v1323, %v433
    %v1326 = vadd.f32 %v1324, 1e-05
    %v1327 = vadd.f32 %v1325, 1e-05
    %v1328 = vrsqrt.pop %v1326
    %v1329 = vrsqrt.pop %v1327
    %v1330 = vmul.f32 %v1306, %v1328
    %v1331 = vmul.f32 %v1307, %v1329
    %v1332 = vmul.f32 %v1330, %v1234
    %v1333 = vmul.f32 %v1331, %v1234
    %v1334 = vadd.f32 %v1332, %v1242
    %v1335 = vadd.f32 %v1333, %v1242
    %v1337 = vlaneseq
    %v1338 = vshrl.u32 %v1337, 7
    %v1339 = vsub.s32 0, %v1338
    %v1340 = vrot.slane %v197, %v1339
    %v1343 = vsel %vm253, %v207, 0
    %1345 = vmatprep.subr.bf16.mxu0 0
    %1346 = vmatpush1.bf16.msra.mxu0 %v1343
    %1347 = vmatprep.subr.bf16.mxu0 0
    %1348 = vmatpush1.bf16.msra.mxu0 0
    %1349 = vmatprep.subr.bf16.mxu0 0
    %1350 = vmatpush1.bf16.msra.mxu0 0
    %1351 = vmatprep.subr.bf16.mxu0 0
    %1352 = vmatpush1.bf16.msra.mxu0 0
    %1353 = vmatprep.subr.bf16.mxu0 0
    %1354 = vmatpush1.bf16.msra.mxu0 0
    %1355 = vmatprep.subr.bf16.mxu0 0
    %1356 = vmatpush1.bf16.msra.mxu0 0
    %1357 = vmatprep.subr.bf16.mxu0 0
    %1358 = vmatpush1.bf16.msra.mxu0 0
    %1359 = vmatprep.subr.bf16.mxu0 0
    %1360 = vmatpush1.bf16.msra.mxu0 0
    %1361 = vmatprep.subr.bf16.mxu0 0
    %1362 = vmatpush1.bf16.msra.mxu0 0
    %1363 = vmatprep.subr.bf16.mxu0 0
    %1364 = vmatpush1.bf16.msra.mxu0 0
    %1365 = vmatprep.subr.bf16.mxu0 0
    %1366 = vmatpush1.bf16.msra.mxu0 0
    %1367 = vmatprep.subr.bf16.mxu0 0
    %1368 = vmatpush1.bf16.msra.mxu0 0
    %1369 = vmatprep.subr.bf16.mxu0 0
    %1370 = vmatpush1.bf16.msra.mxu0 0
    %1371 = vmatprep.subr.bf16.mxu0 0
    %1372 = vmatpush1.bf16.msra.mxu0 0
    %1373 = vmatprep.subr.bf16.mxu0 0
    %1374 = vmatpush1.bf16.msra.mxu0 0
    %1375 = vmatprep.subr.bf16.mxu0 0
    %1376 = vmatpush1.bf16.msra.mxu0 0
    %1377 = vmatprep.mubr.bf16.mxu0 0
    %1378 = vmatmul.mubr.bf16.gmra.mrb[0].mxu0 %v790
    %v1379 = vpop.f32.mrb[0].mxu0
    %v1380 = vadd.f32 %v1340, %v1379
    %v1381 = vpop.f32.mrb[0].mxu0
    %v1382 = vpop.f32.mrb[0].mxu0
    %v1383 = vadd.f32 %v1340, %v1382
    %v1384 = vpop.f32.mrb[0].mxu0
    %1385 = vdwg.mxu0
    %v1386 = vmul.f32 %v1380, %v1380
    %v1387 = vmul.f32 %v1383, %v1383
    %v1388 = vsel %vm319, %v1386, 0.0
    %1389 = vadd.xlane.f32.xlu0 %v1388
    %v1390 = vpop.xlane.xlu0 %1389
    %v1391 = vsel %vm319, %v1387, 0.0
    %1392 = vadd.xlane.f32.xlu0 %v1391
    %v1393 = vpop.xlane.xlu0 %1392
    %v1394 = vmax.f32 %v1390, 1e-24
    %v1395 = vmax.f32 %v1393, 1e-24
    %v1396 = vrsqrt.pop %v1394
    %v1397 = vrsqrt.pop %v1395
    %v1398 = vmul.f32 %v1380, %v1396
    %v1399 = vmul.f32 %v1383, %v1397
    %v1400 = vpack.c.bf16 %v1245, %v1244
    %v1401 = vpack.c.bf16 %v1291, %v1290
    %1403 = vrot.lane.b32.xlu0 %v1401, 96
    %v1404 = vpop.permute.xlu0 %1403
    %v1406 = vsel %vm319, %v1400, 0
    %v1409 = vsel %vm319, %v1404, 0
    %1411 = vmatprep.subr.bf16.mxu0 0
    %1412 = vmatpush1.bf16.xpose.msra.mxu0 %v1409
    %1413 = vmatprep.subr.bf16.mxu0 0
    %1414 = vmatpush1.bf16.xpose.msra.mxu0 0
    %1415 = vmatprep.subr.bf16.mxu0 0
    %1416 = vmatpush1.bf16.xpose.msra.mxu0 0
    %1417 = vmatprep.subr.bf16.mxu0 0
    %1418 = vmatpush1.bf16.xpose.msra.mxu0 0
    %1419 = vmatprep.subr.bf16.mxu0 0
    %1420 = vmatpush1.bf16.xpose.msra.mxu0 0
    %1421 = vmatprep.subr.bf16.mxu0 0
    %1422 = vmatpush1.bf16.xpose.msra.mxu0 0
    %1423 = vmatprep.subr.bf16.mxu0 0
    %1424 = vmatpush1.bf16.xpose.msra.mxu0 0
    %1425 = vmatprep.subr.bf16.mxu0 0
    %1426 = vmatpush1.bf16.xpose.msra.mxu0 0
    %1427 = vmatprep.subr.bf16.mxu0 0
    %1428 = vmatpush1.bf16.xpose.msra.mxu0 0
    %1429 = vmatprep.subr.bf16.mxu0 0
    %1430 = vmatpush1.bf16.xpose.msra.mxu0 0
    %1431 = vmatprep.subr.bf16.mxu0 0
    %1432 = vmatpush1.bf16.xpose.msra.mxu0 0
    %1433 = vmatprep.subr.bf16.mxu0 0
    %1434 = vmatpush1.bf16.xpose.msra.mxu0 0
    %1435 = vmatprep.subr.bf16.mxu0 0
    %1436 = vmatpush1.bf16.xpose.msra.mxu0 0
    %1437 = vmatprep.subr.bf16.mxu0 0
    %1438 = vmatpush1.bf16.xpose.msra.mxu0 0
    %1439 = vmatprep.subr.bf16.mxu0 0
    %1440 = vmatpush1.bf16.xpose.msra.mxu0 0
    %1441 = vmatprep.subr.bf16.mxu0 0
    %1442 = vmatpush1.bf16.xpose.msra.mxu0 0
    %1443 = vmatprep.mubr.bf16.mxu0 0
    %1444 = vmatmul.mubr.bf16.gmra.mrb[0].mxu0 %v1406
    %v1445 = vpop.f32.mrb[0].mxu0
    %v1446 = vadd.f32 0.0, %v1445
    %v1447 = vpop.f32.mrb[0].mxu0
    %v1448 = vpop.f32.mrb[0].mxu0
    %v1449 = vadd.f32 0.0, %v1448
    %v1450 = vpop.f32.mrb[0].mxu0
    %1451 = vdwg.mxu0
    %v1452 = vmul.f32 %v1446, 0.17677669
    %v1453 = vmul.f32 %v1449, 0.17677669
    %v1454 = vpack.c.bf16 %v1399, %v1398
    %v1456 = vsel %vm319, %v1454, 0
    %1458 = vmatprep.subr.bf16.mxu0 0
    %1459 = vmatpush1.bf16.xpose.msra.mxu0 %v1456
    %1460 = vmatprep.subr.bf16.mxu0 0
    %1461 = vmatpush1.bf16.xpose.msra.mxu0 0
    %1462 = vmatprep.subr.bf16.mxu0 0
    %1463 = vmatpush1.bf16.xpose.msra.mxu0 0
    %1464 = vmatprep.subr.bf16.mxu0 0
    %1465 = vmatpush1.bf16.xpose.msra.mxu0 0
    %1466 = vmatprep.subr.bf16.mxu0 0
    %1467 = vmatpush1.bf16.xpose.msra.mxu0 0
    %1468 = vmatprep.subr.bf16.mxu0 0
    %1469 = vmatpush1.bf16.xpose.msra.mxu0 0
    %1470 = vmatprep.subr.bf16.mxu0 0
    %1471 = vmatpush1.bf16.xpose.msra.mxu0 0
    %1472 = vmatprep.subr.bf16.mxu0 0
    %1473 = vmatpush1.bf16.xpose.msra.mxu0 0
    %1474 = vmatprep.subr.bf16.mxu0 0
    %1475 = vmatpush1.bf16.xpose.msra.mxu0 0
    %1476 = vmatprep.subr.bf16.mxu0 0
    %1477 = vmatpush1.bf16.xpose.msra.mxu0 0
    %1478 = vmatprep.subr.bf16.mxu0 0
    %1479 = vmatpush1.bf16.xpose.msra.mxu0 0
    %1480 = vmatprep.subr.bf16.mxu0 0
    %1481 = vmatpush1.bf16.xpose.msra.mxu0 0
    %1482 = vmatprep.subr.bf16.mxu0 0
    %1483 = vmatpush1.bf16.xpose.msra.mxu0 0
    %1484 = vmatprep.subr.bf16.mxu0 0
    %1485 = vmatpush1.bf16.xpose.msra.mxu0 0
    %1486 = vmatprep.subr.bf16.mxu0 0
    %1487 = vmatpush1.bf16.xpose.msra.mxu0 0
    %1488 = vmatprep.subr.bf16.mxu0 0
    %1489 = vmatpush1.bf16.xpose.msra.mxu0 0
    %1490 = vmatprep.mubr.bf16.mxu0 0
    %1491 = vmatmul.mubr.bf16.gmra.mrb[0].mxu0 %v1456
    %v1492 = vpop.f32.mrb[0].mxu0
    %v1493 = vadd.f32 0.0, %v1492
    %v1494 = vpop.f32.mrb[0].mxu0
    %v1495 = vpop.f32.mrb[0].mxu0
    %v1496 = vadd.f32 0.0, %v1495
    %v1497 = vpop.f32.mrb[0].mxu0
    %1498 = vdwg.mxu0
    %v1499 = vadd.f32 %v1452, %v1493
    %v1500 = vadd.f32 %v1453, %v1496
    %v1501 = vmul.f32 %v1499, %v240
    %v1502 = vmul.f32 %v1500, %v241
    %v1503 = vadd.f32 %v1501, %v955
    %v1504 = vadd.f32 %v1502, %v956
    %v1505 = vsel %vm959, %v1503, -inf
    %1506 = vmax.xlane.f32.xlu0 %v1505
    %v1507 = vpop.xlane.xlu0 %1506
    %v1508 = vsel %vm959, %v1504, -inf
    %1509 = vmax.xlane.f32.xlu0 %v1508
    %v1510 = vpop.xlane.xlu0 %1509
    %v1511 = vsub.f32 %v1503, %v1507
    %v1512 = vsub.f32 %v1504, %v1510
    %v1513 = vmul.f32 %v1511, 1.442695
    %v1514 = vpow.pop %v1513
    %v1515 = vmul.f32 %v1512, 1.442695
    %v1516 = vpow.pop %v1515
    %v1517 = vsel %vm959, %v1514, 0.0
    %1518 = vadd.xlane.f32.xlu0 %v1517
    %v1519 = vpop.xlane.xlu0 %1518
    %v1520 = vsel %vm959, %v1516, 0.0
    %1521 = vadd.xlane.f32.xlu0 %v1520
    %v1522 = vpop.xlane.xlu0 %1521
    %v1523 = vrcp.pop %v1519
    %v1524 = vrcp.pop %v1522
    %v1525 = vmul.f32 %v1514, %v1523
    %v1526 = vmul.f32 %v1516, %v1524
    %v1527 = vpack.c.bf16 %v1526, %v1525
    %v1528 = vpack.c.bf16 %v1335, %v1334
    %1530 = vrot.lane.b32.xlu0 %v1528, 64
    %v1531 = vpop.permute.xlu0 %1530
    %v1534 = vsel %vm959, %v1527, 0
    %1536 = vmatprep.subr.bf16.mxu0 0
    %1537 = vmatpush1.bf16.msra.mxu0 %v1531
    %1538 = vmatprep.subr.bf16.mxu0 0
    %1539 = vmatpush1.bf16.msra.mxu0 0
    %1540 = vmatprep.subr.bf16.mxu0 0
    %1541 = vmatpush1.bf16.msra.mxu0 0
    %1542 = vmatprep.subr.bf16.mxu0 0
    %1543 = vmatpush1.bf16.msra.mxu0 0
    %1544 = vmatprep.subr.bf16.mxu0 0
    %1545 = vmatpush1.bf16.msra.mxu0 0
    %1546 = vmatprep.subr.bf16.mxu0 0
    %1547 = vmatpush1.bf16.msra.mxu0 0
    %1548 = vmatprep.subr.bf16.mxu0 0
    %1549 = vmatpush1.bf16.msra.mxu0 0
    %1550 = vmatprep.subr.bf16.mxu0 0
    %1551 = vmatpush1.bf16.msra.mxu0 0
    %1552 = vmatprep.subr.bf16.mxu0 0
    %1553 = vmatpush1.bf16.msra.mxu0 0
    %1554 = vmatprep.subr.bf16.mxu0 0
    %1555 = vmatpush1.bf16.msra.mxu0 0
    %1556 = vmatprep.subr.bf16.mxu0 0
    %1557 = vmatpush1.bf16.msra.mxu0 0
    %1558 = vmatprep.subr.bf16.mxu0 0
    %1559 = vmatpush1.bf16.msra.mxu0 0
    %1560 = vmatprep.subr.bf16.mxu0 0
    %1561 = vmatpush1.bf16.msra.mxu0 0
    %1562 = vmatprep.subr.bf16.mxu0 0
    %1563 = vmatpush1.bf16.msra.mxu0 0
    %1564 = vmatprep.subr.bf16.mxu0 0
    %1565 = vmatpush1.bf16.msra.mxu0 0
    %1566 = vmatprep.subr.bf16.mxu0 0
    %1567 = vmatpush1.bf16.msra.mxu0 0
    %1568 = vmatprep.mubr.bf16.mxu0 0
    %1569 = vmatmul.mubr.bf16.gmra.mrb[0].mxu0 %v1534
    %v1570 = vpop.f32.mrb[0].mxu0
    %v1571 = vadd.f32 %v1072, %v1570
    %v1572 = vpop.f32.mrb[0].mxu0
    %v1573 = vpop.f32.mrb[0].mxu0
    %v1574 = vadd.f32 %v1073, %v1573
    %v1575 = vpop.f32.mrb[0].mxu0
    %1576 = vdwg.mxu0
    %v1577 = vsel %vm319, %v1571, 0.0
    %1578 = vadd.xlane.f32.xlu0 %v1577
    %v1579 = vpop.xlane.xlu0 %1578
    %v1580 = vsel %vm319, %v1574, 0.0
    %1581 = vadd.xlane.f32.xlu0 %v1580
    %v1582 = vpop.xlane.xlu0 %1581
    %v1583 = vmul.f32 %v1579, %v433
    %v1584 = vmul.f32 %v1582, %v433
    %v1585 = vsub.f32 %v1571, %v1583
    %v1586 = vsub.f32 %v1574, %v1584
    %v1587 = vmul.f32 %v1585, %v1585
    %v1588 = vmul.f32 %v1586, %v1586
    %v1589 = vsel %vm319, %v1587, 0.0
    %1590 = vadd.xlane.f32.xlu0 %v1589
    %v1591 = vpop.xlane.xlu0 %1590
    %v1592 = vsel %vm319, %v1588, 0.0
    %1593 = vadd.xlane.f32.xlu0 %v1592
    %v1594 = vpop.xlane.xlu0 %1593
    %v1595 = vmul.f32 %v1591, %v433
    %v1596 = vmul.f32 %v1594, %v433
    %v1597 = vadd.f32 %v1595, 1e-05
    %v1598 = vadd.f32 %v1596, 1e-05
    %v1599 = vrsqrt.pop %v1597
    %v1600 = vrsqrt.pop %v1598
    %v1601 = vmul.f32 %v1585, %v1599
    %v1602 = vmul.f32 %v1586, %v1600
    %v1604 = vlaneseq
    %v1605 = vshrl.u32 %v1604, 7
    %v1606 = vsub.s32 0, %v1605
    %v1607 = vrot.slane %v206, %v1606
    %v1609 = vmul.f32 %v1601, %v1607
    %v1610 = vmul.f32 %v1602, %v1607
    %v1612 = vlaneseq
    %v1613 = vshrl.u32 %v1612, 7
    %v1614 = vsub.s32 0, %v1613
    %v1615 = vrot.slane %v205, %v1614
    %v1617 = vadd.f32 %v1609, %v1615
    %v1618 = vadd.f32 %v1610, %v1615
    %1619 = vst.msk [vmem:[#allocation7] sm:$0xff] %vm959, %v1525
    %1620 = vst.msk [vmem:[#allocation7 + $0x8] sm:$0xff] %vm959, %v1526
    %v1621 = vsel %vm319, %v1617, 0.0
    %v1622 = vsel %vm319, %v1618, 0.0
    %v1623 = vadd.f32 %v1621, %v1622
    %v1624 = vrot.slane %v1623, 4
    %v1625 = vadd.f32 %v1623, %v1624
    %v1626 = vrot.slane %v1625, 2
    %v1627 = vadd.f32 %v1625, %v1626
    %v1628 = vrot.slane %v1627, 1
    %v1629 = vadd.f32 %v1627, %v1628
    %v1630 = vpack.c.bf16 %v1629, %v1629
    %v1635 = vunpack.c.l.b16 %v228
    %v1636 = vunpack.c.l.b16 %v229
    %v1637 = vunpack.c.l.b16 %v230
    %v1638 = vunpack.c.l.b16 %v231
    %v1639 = vpack.c.b16 %v1636, %v1635
    %v1640 = vpack.c.b16 %v1638, %v1637
    %v1644 = vsel %vm319, %v1630, 0
    %1646 = vmatprep.subr.bf16.mxu0 0
    %1647 = vmatpush1.bf16.msra.mxu0 %v1639
    %1648 = vmatprep.subr.bf16.mxu0 0
    %1649 = vmatpush1.bf16.msra.mxu0 %v1640
    %1650 = vmatprep.subr.bf16.mxu0 0
    %1651 = vmatpush1.bf16.msra.mxu0 0
    %1652 = vmatprep.subr.bf16.mxu0 0
    %1653 = vmatpush1.bf16.msra.mxu0 0
    %1654 = vmatprep.subr.bf16.mxu0 0
    %1655 = vmatpush1.bf16.msra.mxu0 0
    %1656 = vmatprep.subr.bf16.mxu0 0
    %1657 = vmatpush1.bf16.msra.mxu0 0
    %1658 = vmatprep.subr.bf16.mxu0 0
    %1659 = vmatpush1.bf16.msra.mxu0 0
    %1660 = vmatprep.subr.bf16.mxu0 0
    %1661 = vmatpush1.bf16.msra.mxu0 0
    %1662 = vmatprep.subr.bf16.mxu0 0
    %1663 = vmatpush1.bf16.msra.mxu0 0
    %1664 = vmatprep.subr.bf16.mxu0 0
    %1665 = vmatpush1.bf16.msra.mxu0 0
    %1666 = vmatprep.subr.bf16.mxu0 0
    %1667 = vmatpush1.bf16.msra.mxu0 0
    %1668 = vmatprep.subr.bf16.mxu0 0
    %1669 = vmatpush1.bf16.msra.mxu0 0
    %1670 = vmatprep.subr.bf16.mxu0 0
    %1671 = vmatpush1.bf16.msra.mxu0 0
    %1672 = vmatprep.subr.bf16.mxu0 0
    %1673 = vmatpush1.bf16.msra.mxu0 0
    %1674 = vmatprep.subr.bf16.mxu0 0
    %1675 = vmatpush1.bf16.msra.mxu0 0
    %1676 = vmatprep.subr.bf16.mxu0 0
    %1677 = vmatpush1.bf16.msra.mxu0 0
    %1678 = vmatprep.mubr.bf16.mxu0 0
    %1679 = vmatmul.mubr.bf16.gmra.mrb[0].mxu0 %v1644
    %v1680 = vpop.f32.mrb[0].mxu0
    %v1681 = vadd.f32 %v225, %v1680
    %v1682 = vpop.f32.mrb[0].mxu0
    %v1683 = vpop.f32.mrb[0].mxu0
    %v1684 = vpop.f32.mrb[0].mxu0
    %1685 = vdwg.mxu0
    %v1686 = vsel %vm429, %v1681, 0.0
    %1687 = vadd.xlane.f32.xlu0 %v1686
    %v1688 = vpop.xlane.xlu0 %1687
    %v1689 = vmul.f32 %v1688, %v433
    %v1690 = vsub.f32 %v1681, %v1689
    %v1691 = vmul.f32 %v1690, %v1690
    %v1692 = vsel %vm429, %v1691, 0.0
    %1693 = vadd.xlane.f32.xlu0 %v1692
    %v1694 = vpop.xlane.xlu0 %1693
    %v1695 = vmul.f32 %v1694, %v433
    %v1696 = vadd.f32 %v1695, 1e-05
    %v1697 = vrsqrt.pop %v1696
    %v1698 = vmul.f32 %v1690, %v1697
    %v1699 = vmul.f32 %v1698, %v227
    %v1700 = vadd.f32 %v1699, %v224
    %v1701 = vpack.c.bf16 %v1700, %v1700
    %v1706 = vunpack.c.l.b16 %v232
    %v1707 = vunpack.c.l.b16 %v233
    %v1708 = vunpack.c.l.b16 %v234
    %v1709 = vunpack.c.l.b16 %v235
    %v1710 = vpack.c.b16 %v1707, %v1706
    %v1711 = vpack.c.b16 %v1709, %v1708
    %v1715 = vsel %vm319, %v1701, 0
    %1717 = vmatprep.subr.bf16.mxu0 0
    %1718 = vmatpush1.bf16.msra.mxu0 %v1710
    %1719 = vmatprep.subr.bf16.mxu0 0
    %1720 = vmatpush1.bf16.msra.mxu0 %v1711
    %1721 = vmatprep.subr.bf16.mxu0 0
    %1722 = vmatpush1.bf16.msra.mxu0 0
    %1723 = vmatprep.subr.bf16.mxu0 0
    %1724 = vmatpush1.bf16.msra.mxu0 0
    %1725 = vmatprep.subr.bf16.mxu0 0
    %1726 = vmatpush1.bf16.msra.mxu0 0
    %1727 = vmatprep.subr.bf16.mxu0 0
    %1728 = vmatpush1.bf16.msra.mxu0 0
    %1729 = vmatprep.subr.bf16.mxu0 0
    %1730 = vmatpush1.bf16.msra.mxu0 0
    %1731 = vmatprep.subr.bf16.mxu0 0
    %1732 = vmatpush1.bf16.msra.mxu0 0
    %1733 = vmatprep.subr.bf16.mxu0 0
    %1734 = vmatpush1.bf16.msra.mxu0 0
    %1735 = vmatprep.subr.bf16.mxu0 0
    %1736 = vmatpush1.bf16.msra.mxu0 0
    %1737 = vmatprep.subr.bf16.mxu0 0
    %1738 = vmatpush1.bf16.msra.mxu0 0
    %1739 = vmatprep.subr.bf16.mxu0 0
    %1740 = vmatpush1.bf16.msra.mxu0 0
    %1741 = vmatprep.subr.bf16.mxu0 0
    %1742 = vmatpush1.bf16.msra.mxu0 0
    %1743 = vmatprep.subr.bf16.mxu0 0
    %1744 = vmatpush1.bf16.msra.mxu0 0
    %1745 = vmatprep.subr.bf16.mxu0 0
    %1746 = vmatpush1.bf16.msra.mxu0 0
    %1747 = vmatprep.subr.bf16.mxu0 0
    %1748 = vmatpush1.bf16.msra.mxu0 0
    %1749 = vmatprep.mubr.bf16.mxu0 0
    %1750 = vmatmul.mubr.bf16.gmra.mrb[0].mxu0 %v1715
    %v1751 = vpop.f32.mrb[0].mxu0
    %v1752 = vadd.f32 0.0, %v1751
    %v1753 = vpop.f32.mrb[0].mxu0
    %v1754 = vpop.f32.mrb[0].mxu0
    %v1755 = vpop.f32.mrb[0].mxu0
    %1756 = vdwg.mxu0
    %v1757 = vlaneseq
    %v1758 = vshrl.u32 %v1757, 7
    %v1759 = vsub.s32 0, %v1758
    %v1760 = vrot.slane %v1752, %v1759
    %v1761 = vadd.f32 %v1617, %v1760
    %v1762 = vadd.f32 %v1618, %v1760
    %v1764 = vlaneseq
    %v1765 = vshrl.u32 %v1764, 7
    %v1766 = vsub.s32 0, %v1765
    %v1767 = vrot.slane %v226, %v1766
    %v1769 = vadd.f32 %v1761, %v1767
    %v1770 = vadd.f32 %v1762, %v1767
    %1771 = vst.msk [vmem:[#allocation4] sm:$0xff] %vm319, %v1769
    %1772 = vst.msk [vmem:[#allocation4 + $0x8] sm:$0xff] %vm319, %v1770
    // Predicated region
    $region158: #{encoder_forward.1} parent=1 // pred_check
      _
    $region159: #{encoder_forward.1} parent=1 // pred_check_branch
      %1774 = sbr.rel (0) target = $region161
    $region160: #{encoder_forward.1} parent=1 // pred_region
      %s1776 = ssub.s32 256, 256
      %1777 = vsyncadd [#allocation3], %s1776
      %s1778 = sshll.u32 [#allocation2], 4
      %s1779 = int_to_ptr.vmem [resolvable:$true] %s1778
      %1784 = dma.vmem_to_hbm [thread:$0]  %s1779, 256, %s79, [#allocation3], 128, 128, 8
    $region161: #{encoder_forward.1} parent=1 // pred_fallthru
      _
    // Predicated region
    $region162: #{encoder_forward.1} parent=1 // pred_check
      _
    $region163: #{encoder_forward.1} parent=1 // pred_check_branch
      %1786 = sbr.rel (0) target = $region165
    $region164: #{encoder_forward.1} parent=1 // pred_region
      %s1788 = ssub.s32 256, 256
      %1789 = vsyncadd [#allocation5], %s1788
      %s1790 = sshll.u32 [#allocation4], 4
      %s1791 = int_to_ptr.vmem [resolvable:$true] %s1790
      %1796 = dma.vmem_to_hbm [thread:$0]  %s1791, 256, %s81, [#allocation5], 128, 128, 8
    $region165: #{encoder_forward.1} parent=1 // pred_fallthru
      _
    // Predicated region
    $region166: #{encoder_forward.1} parent=1 // pred_check
      _
    $region167: #{encoder_forward.1} parent=1 // pred_check_branch
      %1798 = sbr.rel (0) target = $region169
    $region168: #{encoder_forward.1} parent=1 // pred_region
      %s1800 = ssub.s32 256, 256
      %1801 = vsyncadd [#allocation5], %s1800
      %s1802 = sshll.u32 [#allocation6], 4
      %s1803 = int_to_ptr.vmem [resolvable:$true] %s1802
      %1808 = dma.vmem_to_hbm [thread:$0]  %s1803, 256, %s83, [#allocation5], 128, 128, 8
    $region169: #{encoder_forward.1} parent=1 // pred_fallthru
      _
    // Predicated region
    $region170: #{encoder_forward.1} parent=1 // pred_check
      _
    $region171: #{encoder_forward.1} parent=1 // pred_check_branch
      %1810 = sbr.rel (0) target = $region173
    $region172: #{encoder_forward.1} parent=1 // pred_region
      %s1812 = ssub.s32 256, 256
      %1813 = vsyncadd [#allocation8], %s1812
      %s1814 = sshll.u32 [#allocation7], 4
      %s1815 = int_to_ptr.vmem [resolvable:$true] %s1814
      %1820 = dma.vmem_to_hbm [thread:$0]  %s1815, 256, %s85, [#allocation8], 128, 128, 8
    $region173: #{encoder_forward.1} parent=1 // pred_fallthru
      _
    // Predicated region
    $region174: #{encoder_forward.1} parent=1 // pred_check
      _
    $region175: #{encoder_forward.1} parent=1 // pred_check_branch
      %1822 = sbr.rel (0) target = $region177
    $region176: #{encoder_forward.1} parent=1 // pred_region
      %1823 = dma.done [#allocation3], 256
    $region177: #{encoder_forward.1} parent=1 // pred_fallthru
      _
    // Predicated region
    $region178: #{encoder_forward.1} parent=1 // pred_check
      _
    $region179: #{encoder_forward.1} parent=1 // pred_check_branch
      %1825 = sbr.rel (0) target = $region181
    $region180: #{encoder_forward.1} parent=1 // pred_region
      %1826 = dma.done [#allocation5], 256
    $region181: #{encoder_forward.1} parent=1 // pred_fallthru
      _
    // Predicated region
    $region182: #{encoder_forward.1} parent=1 // pred_check
      _
    $region183: #{encoder_forward.1} parent=1 // pred_check_branch
      %1828 = sbr.rel (0) target = $region185
    $region184: #{encoder_forward.1} parent=1 // pred_region
      %1829 = dma.done [#allocation5], 256
    $region185: #{encoder_forward.1} parent=1 // pred_fallthru
      _
    // Predicated region
    $region186: #{encoder_forward.1} parent=1 // pred_check
      _
    $region187: #{encoder_forward.1} parent=1 // pred_check_branch
      %1831 = sbr.rel (0) target = $region189
    $region188: #{encoder_forward.1} parent=1 // pred_region
      %1832 = dma.done [#allocation8], 256
    $region189: #{encoder_forward.1} parent=1 // pred_fallthru
      _
    %1833 = vsyncpa [#allocation3], 1
    %1834 = vsyncpa [#allocation5], 1
    %1835 = vsyncpa [#allocation8], 1

</llo_original>
